<compile_context>
chip_gen: v7x
topology: tpu7x:2x2x1
jax: 0.10.0
libtpu: 0.0.40
codegen_flags: <defaults>
</compile_context>

<pallas_src>
import functools

import jax
import jax.numpy as jnp
from jax import lax
from jax.experimental import pallas as pl
from jax.experimental.pallas import tpu as pltpu


def orchnet_kernel(x_ref,
                   w1_ref, b1_ref, w2_ref, b2_ref, w3_ref, b3_ref,
                   wh_ref, bh_ref, o_ref,
                   mac_acc, sum_acc, cub_acc, *, n_points):
    """One batch element (grid axis 0) x one point chunk (grid axis 1)."""
    j = pl.program_id(1)
    nc = pl.num_programs(1)

    @pl.when(j == 0)
    def _init():
        # f >= 0 after ReLU, so a zero init of the running max is exact.
        mac_acc[...] = jnp.zeros_like(mac_acc)
        sum_acc[...] = jnp.zeros_like(sum_acc)
        cub_acc[...] = jnp.zeros_like(cub_acc)

    # ---- PointNet_features backbone: three 1x1 convs = per-point matmuls.
    # Layer 1 contracts the channel dim (dim 0) of the channels-first x tile
    # directly against w1 (x^T @ w1, no materialized transpose).
    x = x_ref[0]                                            # (Cin, tn)
    h = lax.dot_general(x, w1_ref[...],
                        (((0,), (0,)), ((), ())),
                        preferred_element_type=jnp.float32)  # (tn, 64)
    h = jnp.maximum(h + b1_ref[...], 0.0)
    h = jnp.maximum(
        jnp.dot(h.astype(w2_ref.dtype), w2_ref[...],
                preferred_element_type=jnp.float32) + b2_ref[...], 0.0)
    f = jnp.maximum(
        jnp.dot(h.astype(w3_ref.dtype), w3_ref[...],
                preferred_element_type=jnp.float32) + b3_ref[...], 0.0)
    # f: (tn, Fp) per-point features, lane-dense; padded feature lanes are 0.

    # ---- Chunked MultiHead pooling accumulators.
    # SPoC / GeM partial sums as ones-row matmuls on the idle MXU; only MAC's
    # max stays on the VPU/XLU.
    ones_row = jnp.ones((1, f.shape[0]), jnp.float32)
    mac_acc[...] = jnp.maximum(mac_acc[...], jnp.max(f, axis=0, keepdims=True))
    sum_acc[...] += jnp.dot(ones_row, f, preferred_element_type=jnp.float32)
    cub_acc[...] += jnp.dot(ones_row, f * f * f,
                            preferred_element_type=jnp.float32)

    @pl.when(j == nc - 1)
    def _finalize():
        inv_n = 1.0 / float(n_points)
        mac = mac_acc[...]                                   # (1, Fp)
        spoc = sum_acc[...] * inv_n                          # (1, Fp)
        gem = jnp.exp(jnp.log(cub_acc[...] * inv_n + 1e-12) * (1.0 / 3.0))
        # NOTE: GeM on zero-padded feature lanes is ~1e-4, not 0; harmless
        # because the matching rows of the fused head weight are zero.
        pooled = jnp.concatenate([mac, spoc, gem], axis=-1)  # (1, 3*Fp)
        # Fused MultiHead: one matmul replaces the three FCs + softmax-weighted
        # sum (weights pre-scaled and stacked, biases pre-fused in the wrapper).
        fused = jnp.dot(pooled, wh_ref[...],
                        preferred_element_type=jnp.float32) + bh_ref[...]
        inv = lax.rsqrt(jnp.sum(fused * fused, axis=-1, keepdims=True) + 1e-12)
        o_ref[0] = fused * inv                               # (1, Op), lane-dense


def orchnet_forward(x, params, *, tn=None, use_bf16=False):
    B, N, Cin = x.shape
    (w1, b1, w2, b2, w3, b3, wm, bm, ws, bs, wg, bg, wf) = params
    feat_dim, out_dim = wm.shape

    LANE = 128
    Fp = pl.cdiv(feat_dim, LANE) * LANE      # lane-dense feature width
    Op = pl.cdiv(out_dim, LANE) * LANE       # lane-dense output width

    # Point-axis chunk: a multiple of 128 (or the whole axis) that divides N,
    # sized so one chunk's f32 intermediates stay within a small VMEM budget
    # (works for v7x's 64 MiB physical VMEM as well as v6e/v5e).
    if tn is None:
        tn = N
        if N % LANE == 0:
            budget = 8 * 2 ** 20
            for cand in (2048, 1024, 512, 256, 128):
                if N % cand == 0 and cand * (2 * Fp + 192) * 4 <= budget:
                    tn = cand
                    break
    assert N % tn == 0 and (tn % LANE == 0 or tn == N), "bad point chunk size"
    nc = N // tn
    grid = (B, nc)

    def pad2(a, r, c):
        return jnp.pad(a, ((0, r - a.shape[0]), (0, c - a.shape[1])))

    # Zero-pad feat/out dims (padding contributes exact zeros through the head).
    w3p = pad2(w3, w3.shape[0], Fp)
    b3p = pad2(b3, 1, Fp)
    # Fuse the MultiHead: stack [Wm; Ws; Wg] pre-scaled by the softmax fusion
    # weights, fold the three biases the same way -> single in-kernel dot.
    wh = jnp.concatenate([wf[0] * pad2(wm, Fp, Op),
                          wf[1] * pad2(ws, Fp, Op),
                          wf[2] * pad2(wg, Fp, Op)], axis=0)        # (3Fp, Op)
    bh = (wf[0] * pad2(bm, 1, Op) + wf[1] * pad2(bs, 1, Op)
          + wf[2] * pad2(bg, 1, Op))                                # (1, Op)

    # bf16 MXU-input path (beneficial on v5e/v6e/v7x): halves the dominant x
    # HBM stream; all dots accumulate in f32, pooling/GeM/L2-norm stay f32.
    mx = jnp.bfloat16 if use_bf16 else jnp.float32
    xcf = jnp.transpose(x, (0, 2, 1)).astype(mx)   # channels-first (B, Cin, N)
    w1c, w2c, w3c = w1.astype(mx), w2.astype(mx), w3p.astype(mx)

    # Per-step VMEM working-set estimate -> explicit scoped-VMEM limit
    # (raises v5e's 16 MiB default, keeps headroom under v7x's 64 MiB).
    bpe = 2 if use_bf16 else 4
    est = (2 * 8 * tn * bpe                                         # x block x2
           + 2 * (8 * 64 + 64 * 128 + 128 * Fp + 3 * Fp * Op) * bpe  # weights
           + tn * (64 + 128 + 2 * Fp) * 4                           # h / f / f^3
           + 3 * 8 * Fp * 4 + 2 * 8 * Op * 4)                       # acc + out
    vmem_limit = int(min(max(4 * est, 32 * 2 ** 20), 48 * 2 ** 20))

    def const_spec(a):
        # Grid-invariant operand: constant block index -> no per-step re-fetch.
        return pl.BlockSpec(a.shape, lambda b, j: (0,) * a.ndim)

    kernel = functools.partial(orchnet_kernel, n_points=N)

    out3 = pl.pallas_call(
        kernel,
        out_shape=jax.ShapeDtypeStruct((B, 1, Op), jnp.float32),
        grid=grid,
        in_specs=[
            # channels-first x: block last-two dims = (Cin, tn); Cin equals the
            # full dim, tn is a multiple of 128 (or the whole axis).
            pl.BlockSpec((1, Cin, tn), lambda b, j: (b, 0, j)),
            const_spec(w1c), const_spec(b1),
            const_spec(w2c), const_spec(b2),
            const_spec(w3c), const_spec(b3p),
            const_spec(wh), const_spec(bh),
        ],
        # (1, 1, Op) block of a (B, 1, Op) output: full-tile, lane-dense store.
        out_specs=pl.BlockSpec((1, 1, Op), lambda b, j: (b, 0, 0)),
        scratch_shapes=[pltpu.VMEM((1, Fp), jnp.float32),   # MAC running max
                        pltpu.VMEM((1, Fp), jnp.float32),   # SPoC running sum
                        pltpu.VMEM((1, Fp), jnp.float32)],  # GeM sum of cubes
        compiler_params=pltpu.CompilerParams(
            dimension_semantics=("parallel", "arbitrary"),
            vmem_limit_bytes=vmem_limit),
    )(xcf, w1c, b1, w2c, b2, w3c, b3p, wh, bh)

    return out3.reshape(B, Op)[:, :out_dim]


def orchnet_reference(x, params):
    """Pure-JAX reference (same math) for a numerical sanity check."""
    (w1, b1, w2, b2, w3, b3, wm, bm, ws, bs, wg, bg, wf) = params
    h = jnp.maximum(jnp.einsum('bnc,ch->bnh', x, w1) + b1, 0.0)
    h = jnp.maximum(jnp.einsum('bnc,ch->bnh', h, w2) + b2, 0.0)
    f = jnp.maximum(jnp.einsum('bnc,ch->bnh', h, w3) + b3, 0.0)
    mac = jnp.max(f, axis=1)
    spoc = jnp.mean(f, axis=1)
    gem = jnp.exp(jnp.log(jnp.mean(f ** 3, axis=1) + 1e-12) / 3.0)
    d = wf[0] * (mac @ wm + bm) + wf[1] * (spoc @ ws + bs) + wf[2] * (gem @ wg + bg)
    return d / jnp.sqrt(jnp.sum(d * d, axis=-1, keepdims=True) + 1e-12)


def init_params(key, in_channels, feat_dim, out_dim):
    ks = jax.random.split(key, 8)

    def w(k, shape, scale=0.1):
        return (scale * jax.random.normal(k, shape)).astype(jnp.float32)

    w1 = w(ks[0], (in_channels, 64))
    b1 = jnp.zeros((1, 64), jnp.float32)
    w2 = w(ks[1], (64, 128))
    b2 = jnp.zeros((1, 128), jnp.float32)
    w3 = w(ks[2], (128, feat_dim))
    b3 = jnp.zeros((1, feat_dim), jnp.float32)
    wm = w(ks[3], (feat_dim, out_dim))
    bm = w(ks[4], (1, out_dim), 0.01)
    ws = w(ks[5], (feat_dim, out_dim))
    bs = jnp.zeros((1, out_dim), jnp.float32)
    wg = w(ks[6], (feat_dim, out_dim))
    bg = jnp.zeros((1, out_dim), jnp.float32)
    # learned fusion logits -> softmax (constants at inference; folded into the
    # stacked head weight inside the wrapper)
    wf = jax.nn.softmax(jnp.array([0.3, 0.5, 0.2], jnp.float32))
    return (w1, b1, w2, b2, w3, b3, wm, bm, ws, bs, wg, bg, wf)


if __name__ == "__main__":
    B, N, C_IN = 4, 256, 3          # batch, max_points, in_channels
    FEAT_DIM, OUT_DIM = 32, 16      # feat_dim, out_dim

    key = jax.random.PRNGKey(0)
    kx, kp = jax.random.split(key)
    x = jax.random.normal(kx, (B, N, C_IN), dtype=jnp.float32)
    params = init_params(kp, C_IN, FEAT_DIM, OUT_DIM)

    ref = orchnet_reference(x, params)

    # f32 path, tn=128 -> grid (4, 2): >= 2 steps per TensorCore on v7x, and
    # the point-chunk axis exercises the MAC/SPoC/GeM accumulator path.
    out = jax.block_until_ready(orchnet_forward(x, params, tn=128))
    assert out.shape == (B, OUT_DIM)
    assert jnp.allclose(out, ref, rtol=2e-3, atol=2e-4), "f32 mismatch vs reference"

    # bf16 MXU-input path (also useful on v5e), auto chunk size (single chunk
    # here), f32 accumulation; loose sanity check.
    out_bf = jax.block_until_ready(orchnet_forward(x, params, use_bf16=True))
    assert out_bf.shape == (B, OUT_DIM)
    assert jnp.allclose(out_bf, ref, rtol=1e-1, atol=5e-2), "bf16 mismatch vs reference"

    print("KERNEL_OK")
</pallas_src>

<mosaic_0001>
module attributes {stable_mosaic.version = 11 : i64} {
  func.func @orchnet_kernel(%arg0: i32, %arg1: i32, %arg2: memref<1x3x128xf32, #tpu.memory_space<vmem>>, %arg3: memref<3x64xf32, #tpu.memory_space<vmem>>, %arg4: memref<1x64xf32, #tpu.memory_space<vmem>>, %arg5: memref<64x128xf32, #tpu.memory_space<vmem>>, %arg6: memref<1x128xf32, #tpu.memory_space<vmem>>, %arg7: memref<128x128xf32, #tpu.memory_space<vmem>>, %arg8: memref<1x128xf32, #tpu.memory_space<vmem>>, %arg9: memref<384x128xf32, #tpu.memory_space<vmem>>, %arg10: memref<1x128xf32, #tpu.memory_space<vmem>>, %arg11: memref<1x1x128xf32, #tpu.memory_space<vmem>>, %arg12: memref<1x128xf32, #tpu.memory_space<vmem>>, %arg13: memref<1x128xf32, #tpu.memory_space<vmem>>, %arg14: memref<1x128xf32, #tpu.memory_space<vmem>>) attributes {dimension_semantics = [#tpu.dimension_semantics<parallel>, #tpu.dimension_semantics<arbitrary>], iteration_bounds = array<i64: 4, 2>, scalar_prefetch = 0 : i64, scratch_operands = 3 : i64, tpu.core_type = #tpu.core_type<tc>, window_params = [{transform_indices = @transform_0, window_bounds = array<i64: 1, 3, 128>}, {pipeline_mode = #tpu.pipeline_mode<synchronous>, transform_indices = @transform_1, window_bounds = array<i64: 3, 64>}, {pipeline_mode = #tpu.pipeline_mode<synchronous>, transform_indices = @transform_2, window_bounds = array<i64: 1, 64>}, {pipeline_mode = #tpu.pipeline_mode<synchronous>, transform_indices = @transform_3, window_bounds = array<i64: 64, 128>}, {pipeline_mode = #tpu.pipeline_mode<synchronous>, transform_indices = @transform_4, window_bounds = array<i64: 1, 128>}, {pipeline_mode = #tpu.pipeline_mode<synchronous>, transform_indices = @transform_5, window_bounds = array<i64: 128, 128>}, {pipeline_mode = #tpu.pipeline_mode<synchronous>, transform_indices = @transform_6, window_bounds = array<i64: 1, 128>}, {pipeline_mode = #tpu.pipeline_mode<synchronous>, transform_indices = @transform_7, window_bounds = array<i64: 384, 128>}, {pipeline_mode = #tpu.pipeline_mode<synchronous>, transform_indices = @transform_8, window_bounds = array<i64: 1, 128>}, {transform_indices = @transform_9, window_bounds = array<i64: 1, 1, 128>}]} {
    %c0_i32 = arith.constant 0 : i32
    %0 = arith.cmpi eq, %arg1, %c0_i32 : i32
    %1 = arith.extui %0 : i1 to i32
    %c0_i32_0 = arith.constant 0 : i32
    %2 = arith.cmpi ne, %1, %c0_i32_0 : i32
    scf.if %2 {
      %cst_37 = arith.constant 0.000000e+00 : f32
      %45 = vector.broadcast %cst_37 : f32 to vector<1x128xf32>
      %c0_38 = arith.constant 0 : index
      %c0_39 = arith.constant 0 : index
      %46 = vector.load %arg12[%c0_38, %c0_39] : memref<1x128xf32, #tpu.memory_space<vmem>>, vector<1x128xf32>
      tpu.vector_store %arg12[%c0_38, %c0_39], %45 {strides = array<i32>} : memref<1x128xf32, #tpu.memory_space<vmem>>, vector<1x128xf32>,
      %cst_40 = arith.constant 0.000000e+00 : f32
      %47 = vector.broadcast %cst_40 : f32 to vector<1x128xf32>
      %c0_41 = arith.constant 0 : index
      %c0_42 = arith.constant 0 : index
      %48 = vector.load %arg13[%c0_41, %c0_42] : memref<1x128xf32, #tpu.memory_space<vmem>>, vector<1x128xf32>
      tpu.vector_store %arg13[%c0_41, %c0_42], %47 {strides = array<i32>} : memref<1x128xf32, #tpu.memory_space<vmem>>, vector<1x128xf32>,
      %cst_43 = arith.constant 0.000000e+00 : f32
      %49 = vector.broadcast %cst_43 : f32 to vector<1x128xf32>
      %c0_44 = arith.constant 0 : index
      %c0_45 = arith.constant 0 : index
      %50 = vector.load %arg14[%c0_44, %c0_45] : memref<1x128xf32, #tpu.memory_space<vmem>>, vector<1x128xf32>
      tpu.vector_store %arg14[%c0_44, %c0_45], %49 {strides = array<i32>} : memref<1x128xf32, #tpu.memory_space<vmem>>, vector<1x128xf32>,
    } else {
    }
    %c0 = arith.constant 0 : index
    %c0_1 = arith.constant 0 : index
    %c0_2 = arith.constant 0 : index
    %3 = vector.load %arg2[%c0, %c0_1, %c0_2] : memref<1x3x128xf32, #tpu.memory_space<vmem>>, vector<1x3x128xf32>
    %4 = vector.shape_cast %3 : vector<1x3x128xf32> to vector<3x128xf32>
    %c0_3 = arith.constant 0 : index
    %c0_4 = arith.constant 0 : index
    %5 = vector.load %arg3[%c0_3, %c0_4] : memref<3x64xf32, #tpu.memory_space<vmem>>, vector<3x64xf32>
    %cst = arith.constant dense<0.000000e+00> : vector<128x64xf32>
    %6 = tpu.matmul %4, %5, %cst {dimension_numbers = #tpu.dot_dimension_numbers<[0], [0], [1], [1], [0, 1, 1, 1], [], []>} : vector<3x128xf32>, vector<3x64xf32>, vector<128x64xf32> -> vector<128x64xf32>
    %c0_5 = arith.constant 0 : index
    %c0_6 = arith.constant 0 : index
    %7 = vector.load %arg4[%c0_5, %c0_6] : memref<1x64xf32, #tpu.memory_space<vmem>>, vector<1x64xf32>
    %8 = vector.broadcast %7 : vector<1x64xf32> to vector<128x64xf32>
    %9 = arith.addf %6, %8 : vector<128x64xf32>
    %cst_7 = arith.constant 0.000000e+00 : f32
    %10 = vector.broadcast %cst_7 : f32 to vector<128x64xf32>
    %11 = arith.maximumf %9, %10 : vector<128x64xf32>
    %c0_8 = arith.constant 0 : index
    %c0_9 = arith.constant 0 : index
    %12 = vector.load %arg5[%c0_8, %c0_9] : memref<64x128xf32, #tpu.memory_space<vmem>>, vector<64x128xf32>
    %cst_10 = arith.constant dense<0.000000e+00> : vector<128x128xf32>
    %13 = tpu.matmul %11, %12, %cst_10 {dimension_numbers = #tpu.dot_dimension_numbers<[1], [0], [0], [1], [0, 0, 1, 1], [], []>} : vector<128x64xf32>, vector<64x128xf32>, vector<128x128xf32> -> vector<128x128xf32>
    %c0_11 = arith.constant 0 : index
    %c0_12 = arith.constant 0 : index
    %14 = vector.load %arg6[%c0_11, %c0_12] : memref<1x128xf32, #tpu.memory_space<vmem>>, vector<1x128xf32>
    %15 = vector.broadcast %14 : vector<1x128xf32> to vector<128x128xf32>
    %16 = arith.addf %13, %15 : vector<128x128xf32>
    %cst_13 = arith.constant 0.000000e+00 : f32
    %17 = vector.broadcast %cst_13 : f32 to vector<128x128xf32>
    %18 = arith.maximumf %16, %17 : vector<128x128xf32>
    %c0_14 = arith.constant 0 : index
    %c0_15 = arith.constant 0 : index
    %19 = vector.load %arg7[%c0_14, %c0_15] : memref<128x128xf32, #tpu.memory_space<vmem>>, vector<128x128xf32>
    %cst_16 = arith.constant dense<0.000000e+00> : vector<128x128xf32>
    %20 = tpu.matmul %18, %19, %cst_16 {dimension_numbers = #tpu.dot_dimension_numbers<[1], [0], [0], [1], [0, 0, 1, 1], [], []>} : vector<128x128xf32>, vector<128x128xf32>, vector<128x128xf32> -> vector<128x128xf32>
    %c0_17 = arith.constant 0 : index
    %c0_18 = arith.constant 0 : index
    %21 = vector.load %arg8[%c0_17, %c0_18] : memref<1x128xf32, #tpu.memory_space<vmem>>, vector<1x128xf32>
    %22 = vector.broadcast %21 : vector<1x128xf32> to vector<128x128xf32>
    %23 = arith.addf %20, %22 : vector<128x128xf32>
    %cst_19 = arith.constant 0.000000e+00 : f32
    %24 = vector.broadcast %cst_19 : f32 to vector<128x128xf32>
    %25 = arith.maximumf %23, %24 : vector<128x128xf32>
    %cst_20 = arith.constant 1.000000e+00 : f32
    %26 = vector.broadcast %cst_20 : f32 to vector<1x128xf32>
    %c0_21 = arith.constant 0 : index
    %c0_22 = arith.constant 0 : index
    %27 = vector.load %arg12[%c0_21, %c0_22] : memref<1x128xf32, #tpu.memory_space<vmem>>, vector<1x128xf32>
    %cst_23 = arith.constant dense<0xFF800000> : vector<128xf32>
    %28 = vector.multi_reduction <maximumf>, %25, %cst_23 [0] : vector<128x128xf32> to vector<128xf32>
    %29 = vector.shape_cast %28 : vector<128xf32> to vector<1x128xf32>
    %30 = arith.maximumf %27, %29 : vector<1x128xf32>
    %c0_24 = arith.constant 0 : index
    %c0_25 = arith.constant 0 : index
    %31 = vector.load %arg12[%c0_24, %c0_25] : memref<1x128xf32, #tpu.memory_space<vmem>>, vector<1x128xf32>
    tpu.vector_store %arg12[%c0_24, %c0_25], %30 {strides = array<i32>} : memref<1x128xf32, #tpu.memory_space<vmem>>, vector<1x128xf32>,
    %c0_26 = arith.constant 0 : index
    %c0_27 = arith.constant 0 : index
    %32 = vector.load %arg13[%c0_26, %c0_27] : memref<1x128xf32, #tpu.memory_space<vmem>>, vector<1x128xf32>
    %cst_28 = arith.constant dense<0.000000e+00> : vector<1x128xf32>
    %33 = tpu.matmul %26, %25, %cst_28 {dimension_numbers = #tpu.dot_dimension_numbers<[1], [0], [0], [1], [0, 0, 1, 1], [], []>} : vector<1x128xf32>, vector<128x128xf32>, vector<1x128xf32> -> vector<1x128xf32>
    %34 = arith.addf %32, %33 : vector<1x128xf32>
    %c0_29 = arith.constant 0 : index
    %c0_30 = arith.constant 0 : index
    %35 = vector.load %arg13[%c0_29, %c0_30] : memref<1x128xf32, #tpu.memory_space<vmem>>, vector<1x128xf32>
    tpu.vector_store %arg13[%c0_29, %c0_30], %34 {strides = array<i32>} : memref<1x128xf32, #tpu.memory_space<vmem>>, vector<1x128xf32>,
    %c0_31 = arith.constant 0 : index
    %c0_32 = arith.constant 0 : index
    %36 = vector.load %arg14[%c0_31, %c0_32] : memref<1x128xf32, #tpu.memory_space<vmem>>, vector<1x128xf32>
    %37 = arith.mulf %25, %25 : vector<128x128xf32>
    %38 = arith.mulf %37, %25 : vector<128x128xf32>
    %cst_33 = arith.constant dense<0.000000e+00> : vector<1x128xf32>
    %39 = tpu.matmul %26, %38, %cst_33 {dimension_numbers = #tpu.dot_dimension_numbers<[1], [0], [0], [1], [0, 0, 1, 1], [], []>} : vector<1x128xf32>, vector<128x128xf32>, vector<1x128xf32> -> vector<1x128xf32>
    %40 = arith.addf %36, %39 : vector<1x128xf32>
    %c0_34 = arith.constant 0 : index
    %c0_35 = arith.constant 0 : index
    %41 = vector.load %arg14[%c0_34, %c0_35] : memref<1x128xf32, #tpu.memory_space<vmem>>, vector<1x128xf32>
    tpu.vector_store %arg14[%c0_34, %c0_35], %40 {strides = array<i32>} : memref<1x128xf32, #tpu.memory_space<vmem>>, vector<1x128xf32>,
    %c1_i32 = arith.constant 1 : i32
    %42 = arith.cmpi eq, %arg1, %c1_i32 : i32
    %43 = arith.extui %42 : i1 to i32
    %c0_i32_36 = arith.constant 0 : i32
    %44 = arith.cmpi ne, %43, %c0_i32_36 : i32
    scf.if %44 {
      %c0_37 = arith.constant 0 : index
      %c0_38 = arith.constant 0 : index
      %45 = vector.load %arg12[%c0_37, %c0_38] : memref<1x128xf32, #tpu.memory_space<vmem>>, vector<1x128xf32>
      %c0_39 = arith.constant 0 : index
      %c0_40 = arith.constant 0 : index
      %46 = vector.load %arg13[%c0_39, %c0_40] : memref<1x128xf32, #tpu.memory_space<vmem>>, vector<1x128xf32>
      %cst_41 = arith.constant 3.906250e-03 : f32
      %47 = vector.broadcast %cst_41 : f32 to vector<1x128xf32>
      %48 = arith.mulf %46, %47 : vector<1x128xf32>
      %c0_42 = arith.constant 0 : index
      %c0_43 = arith.constant 0 : index
      %49 = vector.load %arg14[%c0_42, %c0_43] : memref<1x128xf32, #tpu.memory_space<vmem>>, vector<1x128xf32>
      %cst_44 = arith.constant 3.906250e-03 : f32
      %50 = vector.broadcast %cst_44 : f32 to vector<1x128xf32>
      %51 = arith.mulf %49, %50 : vector<1x128xf32>
      %cst_45 = arith.constant 9.99999996E-13 : f32
      %52 = vector.broadcast %cst_45 : f32 to vector<1x128xf32>
      %53 = arith.addf %51, %52 : vector<1x128xf32>
      %54 = math.log %53 : vector<1x128xf32>
      %cst_46 = arith.constant 0.333333343 : f32
      %55 = vector.broadcast %cst_46 : f32 to vector<1x128xf32>
      %56 = arith.mulf %54, %55 : vector<1x128xf32>
      %57 = math.exp %56 : vector<1x128xf32>
      %58 = tpu.concatenate %45, %48, %57 in 1 : vector<1x128xf32>, vector<1x128xf32>, vector<1x128xf32> -> vector<1x384xf32>
      %c0_47 = arith.constant 0 : index
      %c0_48 = arith.constant 0 : index
      %59 = vector.load %arg9[%c0_47, %c0_48] : memref<384x128xf32, #tpu.memory_space<vmem>>, vector<384x128xf32>
      %cst_49 = arith.constant dense<0.000000e+00> : vector<1x128xf32>
      %60 = tpu.matmul %58, %59, %cst_49 {dimension_numbers = #tpu.dot_dimension_numbers<[1], [0], [0], [1], [0, 0, 1, 1], [], []>} : vector<1x384xf32>, vector<384x128xf32>, vector<1x128xf32> -> vector<1x128xf32>
      %c0_50 = arith.constant 0 : index
      %c0_51 = arith.constant 0 : index
      %61 = vector.load %arg10[%c0_50, %c0_51] : memref<1x128xf32, #tpu.memory_space<vmem>>, vector<1x128xf32>
      %62 = arith.addf %60, %61 : vector<1x128xf32>
      %63 = arith.mulf %62, %62 : vector<1x128xf32>
      %cst_52 = arith.constant dense<0.000000e+00> : vector<1xf32>
      %64 = vector.multi_reduction <add>, %63, %cst_52 [1] : vector<1x128xf32> to vector<1xf32>
      %65 = vector.shape_cast %64 : vector<1xf32> to vector<1x1xf32>
      %cst_53 = arith.constant 9.99999996E-13 : f32
      %66 = vector.broadcast %cst_53 : f32 to vector<1x1xf32>
      %67 = arith.addf %65, %66 : vector<1x1xf32>
      %68 = math.rsqrt %67 : vector<1x1xf32>
      %69 = vector.broadcast %68 : vector<1x1xf32> to vector<1x128xf32>
      %70 = arith.mulf %62, %69 : vector<1x128xf32>
      %c0_54 = arith.constant 0 : index
      %c0_55 = arith.constant 0 : index
      %c0_56 = arith.constant 0 : index
      %71 = vector.load %arg11[%c0_54, %c0_55, %c0_56] : memref<1x1x128xf32, #tpu.memory_space<vmem>>, vector<1x1x128xf32>
      %72 = vector.shape_cast %71 : vector<1x1x128xf32> to vector<1x128xf32>
      %73 = vector.shape_cast %70 : vector<1x128xf32> to vector<1x1x128xf32>
      tpu.vector_store %arg11[%c0_54, %c0_55, %c0_56], %73 {strides = array<i32>} : memref<1x1x128xf32, #tpu.memory_space<vmem>>, vector<1x1x128xf32>,
    } else {
    }
    return
  }
  func.func @transform_0(%arg0: i32, %arg1: i32) -> (i32, i32, i32) {
    %c0_i32 = arith.constant 0 : i32
    %c0_i32_0 = arith.constant 0 : i32
    return %arg0, %c0_i32, %arg1 : i32, i32, i32
  }
  func.func @transform_1(%arg0: i32, %arg1: i32) -> (i32, i32) {
    %c0_i32 = arith.constant 0 : i32
    %c0_i32_0 = arith.constant 0 : i32
    %c0_i32_1 = arith.constant 0 : i32
    return %c0_i32, %c0_i32_0 : i32, i32
  }
  func.func @transform_2(%arg0: i32, %arg1: i32) -> (i32, i32) {
    %c0_i32 = arith.constant 0 : i32
    %c0_i32_0 = arith.constant 0 : i32
    %c0_i32_1 = arith.constant 0 : i32
    return %c0_i32, %c0_i32_0 : i32, i32
  }
  func.func @transform_3(%arg0: i32, %arg1: i32) -> (i32, i32) {
    %c0_i32 = arith.constant 0 : i32
    %c0_i32_0 = arith.constant 0 : i32
    %c0_i32_1 = arith.constant 0 : i32
    return %c0_i32, %c0_i32_0 : i32, i32
  }
  func.func @transform_4(%arg0: i32, %arg1: i32) -> (i32, i32) {
    %c0_i32 = arith.constant 0 : i32
    %c0_i32_0 = arith.constant 0 : i32
    %c0_i32_1 = arith.constant 0 : i32
    return %c0_i32, %c0_i32_0 : i32, i32
  }
  func.func @transform_5(%arg0: i32, %arg1: i32) -> (i32, i32) {
    %c0_i32 = arith.constant 0 : i32
    %c0_i32_0 = arith.constant 0 : i32
    %c0_i32_1 = arith.constant 0 : i32
    return %c0_i32, %c0_i32_0 : i32, i32
  }
  func.func @transform_6(%arg0: i32, %arg1: i32) -> (i32, i32) {
    %c0_i32 = arith.constant 0 : i32
    %c0_i32_0 = arith.constant 0 : i32
    %c0_i32_1 = arith.constant 0 : i32
    return %c0_i32, %c0_i32_0 : i32, i32
  }
  func.func @transform_7(%arg0: i32, %arg1: i32) -> (i32, i32) {
    %c0_i32 = arith.constant 0 : i32
    %c0_i32_0 = arith.constant 0 : i32
    %c0_i32_1 = arith.constant 0 : i32
    return %c0_i32, %c0_i32_0 : i32, i32
  }
  func.func @transform_8(%arg0: i32, %arg1: i32) -> (i32, i32) {
    %c0_i32 = arith.constant 0 : i32
    %c0_i32_0 = arith.constant 0 : i32
    %c0_i32_1 = arith.constant 0 : i32
    return %c0_i32, %c0_i32_0 : i32, i32
  }
  func.func @transform_9(%arg0: i32, %arg1: i32) -> (i32, i32, i32) {
    %c0_i32 = arith.constant 0 : i32
    %c0_i32_0 = arith.constant 0 : i32
    %c0_i32_1 = arith.constant 0 : i32
    return %arg0, %c0_i32, %c0_i32_0 : i32, i32, i32
  }
}

</mosaic_0001>

<llo_original>
// kernel: tpu_custom_call.1
$region0: #{tpu_custom_call.1}
  #allocation0 [shape = 'u32[]', space=smem, size = 0x4, offset = 0x4, fixed_abs, tag = 'smem constant byte address 0x4 - core index']
  #allocation1 [shape = 'u32[144,128]{1,0:T(1,128)}', space=vmem, size = 0x12000, scoped, tag = 'internal scratch']
  #allocation2 [shape = 'f32[1,128]{1,0:T(1,128)}', space=vmem, size = 0x200, scoped, tag = 'scratch operand']
  #allocation3 [shape = 'f32[1,128]{1,0:T(1,128)}', space=vmem, size = 0x200, scoped, tag = 'scratch operand']
  #allocation4 [shape = 'f32[1,128]{1,0:T(1,128)}', space=vmem, size = 0x200, scoped, tag = 'scratch operand']
  %s0 = inlined_call_operand.vmem [shape: f32[4,3,256], index: 0, kind: input, shape index: {}]
  %s1 = inlined_call_operand.hbm [shape: f32[3,64], index: 1, kind: input, shape index: {}]
  %s2 = inlined_call_operand.vmem [shape: f32[1,64], index: 2, kind: input, shape index: {}]
  %s3 = inlined_call_operand.vmem [shape: f32[64,128], index: 3, kind: input, shape index: {}]
  %s4 = inlined_call_operand.vmem [shape: f32[1,128], index: 4, kind: input, shape index: {}]
  %s5 = inlined_call_operand.hbm [shape: f32[128,128], index: 5, kind: input, shape index: {}]
  %s6 = inlined_call_operand.vmem [shape: f32[1,128], index: 6, kind: input, shape index: {}]
  %s7 = inlined_call_operand.hbm [shape: f32[384,128], index: 7, kind: input, shape index: {}]
  %s8 = inlined_call_operand.vmem [shape: f32[1,128], index: 8, kind: input, shape index: {}]
  %s9 = inlined_call_operand.hbm [shape: f32[4,1,128], index: 9, kind: output, shape index: {}]
  %s10 = sld [smem:[#allocation0]]
  $region89: #{tpu_custom_call.1} parent=0
    _
  %s12 = ssub.s32 1, %s10
  %s13 = scalar_select 0, %s12, %s10
  $region1: #{tpu_custom_call.1} parent=0
    #allocation5 [shape = 'u8[2048]{0}', space=vmem, size = 0x800, scoped, tag = 'input window, operand 1, single buffered']
    #allocation6 [shape = 's32[2]{0}', space=sflag, size = 0x8, scoped, tag = 'scoped memory for tpu_custom_call.1']
    #allocation7 [shape = 's32[2]{0}', space=sflag, size = 0x8, scoped, tag = 'scoped memory for tpu_custom_call.1']
    #allocation8 [shape = 'u8[65536]{0}', space=vmem, size = 0x10000, scoped, tag = 'input window, operand 5, single buffered']
    #allocation9 [shape = 's32[1]{0}', space=sflag, size = 0x4, scoped, tag = 'scoped memory for tpu_custom_call.1']
    #allocation10 [shape = 'u8[196608]{0}', space=vmem, size = 0x30000, scoped, tag = 'input window, operand 7, single buffered']
    #allocation11 [shape = 'u8[1024]{0}', space=vmem, size = 0x400, scoped, tag = 'output window, operand 0']
    %14 = vsyncpa [#allocation6], 0
    %15 = vsyncpa [#allocation9], 0
    %16 = vsyncpa [#allocation7], 0
    %s17 = scalar_lea.sflag [#allocation7], 1
    %18 = vsyncpa %s17, 0
    loop: start=0, step=1, limit=10
    $region2: #{tpu_custom_call.1} parent=1 // loop_pre_header
      _
    $region3: #{tpu_custom_call.1} parent=1 // loop_header
      %s20 = sphi 0, %s24
      %p21 = scmp.ge.s32.totalorder %s20, 10
      %s27 = sphi 0, %s39
      %s28 = sphi 0, %s35
      %s29 = sphi 0, %s27
      %s30 = sphi 0, %s28
      %s31 = sphi 0, %s29
      %s32 = sphi 0, %s30
      %s44 = sphi 0, %s46
      %s47 = sphi 0, %s44
      %s48 = sphi 0, %s47
      %s64 = sphi 0, %s48
      %s68 = sphi 0, %s68
      %s70 = sphi 0, %s68
      %s71 = sphi 0, %s70
      %s85 = sphi 0, %s71
      %s89 = sphi 0, %s89
      %s91 = sphi 0, %s89
      %s92 = sphi 0, %s91
      %s106 = sphi 0, %s92
      %s110 = sphi 0, %s110
      %s112 = sphi 0, %s110
      %s113 = sphi 0, %s112
      %s127 = sphi 0, %s113
      %s131 = sphi 0, %s131
      %s133 = sphi 0, %s131
      %s134 = sphi 0, %s133
      %s148 = sphi 0, %s134
      %s152 = sphi 0, %s152
      %s154 = sphi 0, %s152
      %s155 = sphi 0, %s154
      %s169 = sphi 0, %s155
      %s173 = sphi 0, %s173
      %s175 = sphi 0, %s173
      %s176 = sphi 0, %s175
      %s190 = sphi 0, %s176
      %s194 = sphi 0, %s194
      %s196 = sphi 0, %s194
      %s197 = sphi 0, %s196
      %s211 = sphi 0, %s197
      %s215 = sphi 0, %s215
      %s217 = sphi 0, %s215
      %s218 = sphi 0, %s217
      %s232 = sphi 0, %s218
      %s238 = sphi 0, %s240
      %s241 = sphi 0, %s238
      %s242 = sphi 0, %s241
      %s258 = sphi 0, %s242
    $region4: #{tpu_custom_call.1} parent=1 // loop_header_branch
      %23 = sbr.rel (%p21) target = $region8
    $region5: #{tpu_custom_call.1} parent=1 // loop_body
      %s25 = ssub.s32 %s20, 1
      %s26 = ssub.s32 %s20, 2
      %s33 = sadd.s32 1, %s28
      %p34 = scmp.ge.s32.totalorder %s33, 2
      %s35 = scalar_select %p34, 0, %s33
      %s36 = sadd.s32 1, %s27
      %s37 = scalar_select %p34, %s36, %s27
      %p38 = scmp.ge.s32.totalorder %s37, 4
      %s39 = scalar_select %p38, 0, %s37
      %s40 = ssub.s32 %s27, %s39
      %s41 = ssub.s32 %s28, %s35
      %s42 = sor.u32 %s40, %s41
      %p43 = scmp.eq.s32.totalorder %s42, 0
      %s45 = sadd.s32 %s44, 1
      %s46 = scalar_select %p43, %s44, %s45
      %p49 = pneg %p43
      %p50 = scmp.eq.s32.totalorder %s20, 7
      %p51 = por %p49, %p50
      %p52 = scmp.ne.s32.totalorder %s44, %s47
      %p53 = scmp.eq.s32.totalorder %s20, 0
      %p54 = por %p52, %p53
      %p55 = scmp.ne.s32.totalorder %s44, %s47
      %p56 = scmp.eq.s32.totalorder %s25, 7
      %p57 = por %p55, %p56
      %p58 = scmp.ne.s32.totalorder %s47, %s48
      %p59 = scmp.eq.s32.totalorder %s25, 0
      %p60 = por %p58, %p59
      %p61 = scmp.ne.s32.totalorder %s47, %s48
      %p62 = scmp.eq.s32.totalorder %s26, 7
      %p63 = por %p61, %p62
      %p65 = scmp.ne.s32.totalorder %s48, %s64
      %p66 = scmp.eq.s32.totalorder %s26, 0
      %p67 = por %p65, %p66
      %s69 = sadd.s32 %s68, 1
      %p72 = scmp.eq.s32.totalorder %s20, 7
      %p73 = scmp.ne.s32.totalorder %s68, %s70
      %p74 = scmp.eq.s32.totalorder %s20, 0
      %p75 = por %p73, %p74
      %p76 = scmp.ne.s32.totalorder %s68, %s70
      %p77 = scmp.eq.s32.totalorder %s25, 7
      %p78 = por %p76, %p77
      %p79 = scmp.ne.s32.totalorder %s70, %s71
      %p80 = scmp.eq.s32.totalorder %s25, 0
      %p81 = por %p79, %p80
      %p82 = scmp.ne.s32.totalorder %s70, %s71
      %p83 = scmp.eq.s32.totalorder %s26, 7
      %p84 = por %p82, %p83
      %p86 = scmp.ne.s32.totalorder %s71, %s85
      %p87 = scmp.eq.s32.totalorder %s26, 0
      %p88 = por %p86, %p87
      %s90 = sadd.s32 %s89, 1
      %p93 = scmp.eq.s32.totalorder %s20, 7
      %p94 = scmp.ne.s32.totalorder %s89, %s91
      %p95 = scmp.eq.s32.totalorder %s20, 0
      %p96 = por %p94, %p95
      %p97 = scmp.ne.s32.totalorder %s89, %s91
      %p98 = scmp.eq.s32.totalorder %s25, 7
      %p99 = por %p97, %p98
      %p100 = scmp.ne.s32.totalorder %s91, %s92
      %p101 = scmp.eq.s32.totalorder %s25, 0
      %p102 = por %p100, %p101
      %p103 = scmp.ne.s32.totalorder %s91, %s92
      %p104 = scmp.eq.s32.totalorder %s26, 7
      %p105 = por %p103, %p104
      %p107 = scmp.ne.s32.totalorder %s92, %s106
      %p108 = scmp.eq.s32.totalorder %s26, 0
      %p109 = por %p107, %p108
      %s111 = sadd.s32 %s110, 1
      %p114 = scmp.eq.s32.totalorder %s20, 7
      %p115 = scmp.ne.s32.totalorder %s110, %s112
      %p116 = scmp.eq.s32.totalorder %s20, 0
      %p117 = por %p115, %p116
      %p118 = scmp.ne.s32.totalorder %s110, %s112
      %p119 = scmp.eq.s32.totalorder %s25, 7
      %p120 = por %p118, %p119
      %p121 = scmp.ne.s32.totalorder %s112, %s113
      %p122 = scmp.eq.s32.totalorder %s25, 0
      %p123 = por %p121, %p122
      %p124 = scmp.ne.s32.totalorder %s112, %s113
      %p125 = scmp.eq.s32.totalorder %s26, 7
      %p126 = por %p124, %p125
      %p128 = scmp.ne.s32.totalorder %s113, %s127
      %p129 = scmp.eq.s32.totalorder %s26, 0
      %p130 = por %p128, %p129
      %s132 = sadd.s32 %s131, 1
      %p135 = scmp.eq.s32.totalorder %s20, 7
      %p136 = scmp.ne.s32.totalorder %s131, %s133
      %p137 = scmp.eq.s32.totalorder %s20, 0
      %p138 = por %p136, %p137
      %p139 = scmp.ne.s32.totalorder %s131, %s133
      %p140 = scmp.eq.s32.totalorder %s25, 7
      %p141 = por %p139, %p140
      %p142 = scmp.ne.s32.totalorder %s133, %s134
      %p143 = scmp.eq.s32.totalorder %s25, 0
      %p144 = por %p142, %p143
      %p145 = scmp.ne.s32.totalorder %s133, %s134
      %p146 = scmp.eq.s32.totalorder %s26, 7
      %p147 = por %p145, %p146
      %p149 = scmp.ne.s32.totalorder %s134, %s148
      %p150 = scmp.eq.s32.totalorder %s26, 0
      %p151 = por %p149, %p150
      %s153 = sadd.s32 %s152, 1
      %p156 = scmp.eq.s32.totalorder %s20, 7
      %p157 = scmp.ne.s32.totalorder %s152, %s154
      %p158 = scmp.eq.s32.totalorder %s20, 0
      %p159 = por %p157, %p158
      %p160 = scmp.ne.s32.totalorder %s152, %s154
      %p161 = scmp.eq.s32.totalorder %s25, 7
      %p162 = por %p160, %p161
      %p163 = scmp.ne.s32.totalorder %s154, %s155
      %p164 = scmp.eq.s32.totalorder %s25, 0
      %p165 = por %p163, %p164
      %p166 = scmp.ne.s32.totalorder %s154, %s155
      %p167 = scmp.eq.s32.totalorder %s26, 7
      %p168 = por %p166, %p167
      %p170 = scmp.ne.s32.totalorder %s155, %s169
      %p171 = scmp.eq.s32.totalorder %s26, 0
      %p172 = por %p170, %p171
      %s174 = sadd.s32 %s173, 1
      %p177 = scmp.eq.s32.totalorder %s20, 7
      %p178 = scmp.ne.s32.totalorder %s173, %s175
      %p179 = scmp.eq.s32.totalorder %s20, 0
      %p180 = por %p178, %p179
      %p181 = scmp.ne.s32.totalorder %s173, %s175
      %p182 = scmp.eq.s32.totalorder %s25, 7
      %p183 = por %p181, %p182
      %p184 = scmp.ne.s32.totalorder %s175, %s176
      %p185 = scmp.eq.s32.totalorder %s25, 0
      %p186 = por %p184, %p185
      %p187 = scmp.ne.s32.totalorder %s175, %s176
      %p188 = scmp.eq.s32.totalorder %s26, 7
      %p189 = por %p187, %p188
      %p191 = scmp.ne.s32.totalorder %s176, %s190
      %p192 = scmp.eq.s32.totalorder %s26, 0
      %p193 = por %p191, %p192
      %s195 = sadd.s32 %s194, 1
      %p198 = scmp.eq.s32.totalorder %s20, 7
      %p199 = scmp.ne.s32.totalorder %s194, %s196
      %p200 = scmp.eq.s32.totalorder %s20, 0
      %p201 = por %p199, %p200
      %p202 = scmp.ne.s32.totalorder %s194, %s196
      %p203 = scmp.eq.s32.totalorder %s25, 7
      %p204 = por %p202, %p203
      %p205 = scmp.ne.s32.totalorder %s196, %s197
      %p206 = scmp.eq.s32.totalorder %s25, 0
      %p207 = por %p205, %p206
      %p208 = scmp.ne.s32.totalorder %s196, %s197
      %p209 = scmp.eq.s32.totalorder %s26, 7
      %p210 = por %p208, %p209
      %p212 = scmp.ne.s32.totalorder %s197, %s211
      %p213 = scmp.eq.s32.totalorder %s26, 0
      %p214 = por %p212, %p213
      %s216 = sadd.s32 %s215, 1
      %p219 = scmp.eq.s32.totalorder %s20, 7
      %p220 = scmp.ne.s32.totalorder %s215, %s217
      %p221 = scmp.eq.s32.totalorder %s20, 0
      %p222 = por %p220, %p221
      %p223 = scmp.ne.s32.totalorder %s215, %s217
      %p224 = scmp.eq.s32.totalorder %s25, 7
      %p225 = por %p223, %p224
      %p226 = scmp.ne.s32.totalorder %s217, %s218
      %p227 = scmp.eq.s32.totalorder %s25, 0
      %p228 = por %p226, %p227
      %p229 = scmp.ne.s32.totalorder %s217, %s218
      %p230 = scmp.eq.s32.totalorder %s26, 7
      %p231 = por %p229, %p230
      %p233 = scmp.ne.s32.totalorder %s218, %s232
      %p234 = scmp.eq.s32.totalorder %s26, 0
      %p235 = por %p233, %p234
      %s236 = ssub.s32 %s27, %s39
      %p237 = scmp.eq.s32.totalorder %s236, 0
      %s239 = sadd.s32 %s238, 1
      %s240 = scalar_select %p237, %s238, %s239
      %p243 = pneg %p237
      %p244 = scmp.eq.s32.totalorder %s20, 7
      %p245 = por %p243, %p244
      %p246 = scmp.ne.s32.totalorder %s238, %s241
      %p247 = scmp.eq.s32.totalorder %s20, 0
      %p248 = por %p246, %p247
      %p249 = scmp.ne.s32.totalorder %s238, %s241
      %p250 = scmp.eq.s32.totalorder %s25, 7
      %p251 = por %p249, %p250
      %p252 = scmp.ne.s32.totalorder %s241, %s242
      %p253 = scmp.eq.s32.totalorder %s25, 0
      %p254 = por %p252, %p253
      %p255 = scmp.ne.s32.totalorder %s241, %s242
      %p256 = scmp.eq.s32.totalorder %s26, 7
      %p257 = por %p255, %p256
      %p259 = scmp.ne.s32.totalorder %s242, %s258
      %p260 = scmp.eq.s32.totalorder %s26, 0
      %p261 = por %p259, %p260
      %p262 = scmp.le.s32.totalorder 1, %s20
      %p263 = scmp.lt.s32.totalorder %s20, 9
      %p264 = pnand %p262, %p263
      %p265 = pneg %p264
      // Predicated region
      $region9: #{tpu_custom_call.1} parent=5 // pred_check
        _
      $region10: #{tpu_custom_call.1} parent=5 // pred_check_branch
        %267 = sbr.rel (%p264) target = $region12
      $region11: #{tpu_custom_call.1} parent=5 // pred_region
        %s268 = ssub.s32 %s20, 1
        // Predicated region
        $region13: #{tpu_custom_call.1} parent=11 // pred_check
          %p269 = pneg %p81
        $region14: #{tpu_custom_call.1} parent=11 // pred_check_branch
          %271 = sbr.rel (%p269) target = $region16
        $region15: #{tpu_custom_call.1} parent=11 // pred_region
          %s273 = ssub.s32 64, 64
          %274 = vsyncadd [#allocation6], %s273
          %s276 = sshll.u32 [#allocation5], 4
          %s277 = int_to_ptr.vmem [resolvable:$true] %s276
          %279 = dma.hbm_to_vmem [thread:$0]  %s1, 64, %s277, [#allocation6]
        $region16: #{tpu_custom_call.1} parent=11 // pred_fallthru
          _
        // Predicated region
        $region17: #{tpu_custom_call.1} parent=11 // pred_check
          %p280 = pneg %p102
        $region18: #{tpu_custom_call.1} parent=11 // pred_check_branch
          %282 = sbr.rel (%p280) target = $region20
        $region19: #{tpu_custom_call.1} parent=11 // pred_region
          _
        $region20: #{tpu_custom_call.1} parent=11 // pred_fallthru
          _
        // Predicated region
        $region21: #{tpu_custom_call.1} parent=11 // pred_check
          %p283 = pneg %p123
        $region22: #{tpu_custom_call.1} parent=11 // pred_check_branch
          %285 = sbr.rel (%p283) target = $region24
        $region23: #{tpu_custom_call.1} parent=11 // pred_region
          _
        $region24: #{tpu_custom_call.1} parent=11 // pred_fallthru
          _
        // Predicated region
        $region25: #{tpu_custom_call.1} parent=11 // pred_check
          %p286 = pneg %p144
        $region26: #{tpu_custom_call.1} parent=11 // pred_check_branch
          %288 = sbr.rel (%p286) target = $region28
        $region27: #{tpu_custom_call.1} parent=11 // pred_region
          _
        $region28: #{tpu_custom_call.1} parent=11 // pred_fallthru
          _
        // Predicated region
        $region29: #{tpu_custom_call.1} parent=11 // pred_check
          %p289 = pneg %p165
        $region30: #{tpu_custom_call.1} parent=11 // pred_check_branch
          %291 = sbr.rel (%p289) target = $region32
        $region31: #{tpu_custom_call.1} parent=11 // pred_region
          %s293 = ssub.s32 2048, 2048
          %294 = vsyncadd [#allocation9], %s293
          %s295 = sshll.u32 [#allocation8], 4
          %s296 = int_to_ptr.vmem [resolvable:$true] %s295
          %301 = dma.hbm_to_vmem [thread:$0]  %s5, 2048, %s296, [#allocation9], 128, 128, 8
        $region32: #{tpu_custom_call.1} parent=11 // pred_fallthru
          _
        // Predicated region
        $region33: #{tpu_custom_call.1} parent=11 // pred_check
          %p302 = pneg %p186
        $region34: #{tpu_custom_call.1} parent=11 // pred_check_branch
          %304 = sbr.rel (%p302) target = $region36
        $region35: #{tpu_custom_call.1} parent=11 // pred_region
          _
        $region36: #{tpu_custom_call.1} parent=11 // pred_fallthru
          _
        // Predicated region
        $region37: #{tpu_custom_call.1} parent=11 // pred_check
          %p305 = pneg %p207
        $region38: #{tpu_custom_call.1} parent=11 // pred_check_branch
          %307 = sbr.rel (%p305) target = $region40
        $region39: #{tpu_custom_call.1} parent=11 // pred_region
          %s309 = ssub.s32 6144, 6144
          %310 = vsyncadd [#allocation9], %s309
          %s311 = sshll.u32 [#allocation10], 4
          %s312 = int_to_ptr.vmem [resolvable:$true] %s311
          %317 = dma.hbm_to_vmem [thread:$0]  %s7, 6144, %s312, [#allocation9], 128, 128, 8
        $region40: #{tpu_custom_call.1} parent=11 // pred_fallthru
          _
        // Predicated region
        $region41: #{tpu_custom_call.1} parent=11 // pred_check
          %p318 = pneg %p228
        $region42: #{tpu_custom_call.1} parent=11 // pred_check_branch
          %320 = sbr.rel (%p318) target = $region44
        $region43: #{tpu_custom_call.1} parent=11 // pred_region
          _
        $region44: #{tpu_custom_call.1} parent=11 // pred_fallthru
          _
      $region12: #{tpu_custom_call.1} parent=5 // pred_fallthru
        _
      %p321 = scmp.lt.s32.totalorder %s20, 8
      // Predicated region
      $region45: #{tpu_custom_call.1} parent=5 // pred_check
        %p322 = pneg %p321
      $region46: #{tpu_custom_call.1} parent=5 // pred_check_branch
        %324 = sbr.rel (%p322) target = $region48
      $region47: #{tpu_custom_call.1} parent=5 // pred_region
        // Predicated region
        $region49: #{tpu_custom_call.1} parent=47 // pred_check
          %p325 = pneg %p54
        $region50: #{tpu_custom_call.1} parent=47 // pred_check_branch
          %327 = sbr.rel (%p325) target = $region52
        $region51: #{tpu_custom_call.1} parent=47 // pred_region
          %p328 = scmp.lt.s32.totalorder %s27, 3
          %s329 = scalar_select %p328, %s27, 3
          %p330 = scmp.lt.s32.totalorder %s28, 1
          %s331 = scalar_select %p330, %s28, 1
          %s332 = smul.addr %s329, 2
          %s333 = sadd.s32 %s331, %s332
          %s334 = smul.addr %s333, 4
          %s335 = scalar_lea.vmem %s0, %s334
        $region52: #{tpu_custom_call.1} parent=47 // pred_fallthru
          _
      $region48: #{tpu_custom_call.1} parent=5 // pred_fallthru
        _
      %p336 = scmp.le.s32.totalorder 1, %s20
      %p337 = scmp.lt.s32.totalorder %s20, 9
      %p338 = pnand %p336, %p337
      %p339 = pneg %p338
      // Predicated region
      $region53: #{tpu_custom_call.1} parent=5 // pred_check
        _
      $region54: #{tpu_custom_call.1} parent=5 // pred_check_branch
        %341 = sbr.rel (%p338) target = $region56
      $region55: #{tpu_custom_call.1} parent=5 // pred_region
        %s342 = ssub.s32 %s20, 1
        // Predicated region
        $region57: #{tpu_custom_call.1} parent=55 // pred_check
          %p343 = pneg %p81
        $region58: #{tpu_custom_call.1} parent=55 // pred_check_branch
          %345 = sbr.rel (%p343) target = $region60
        $region59: #{tpu_custom_call.1} parent=55 // pred_region
          %346 = dma.done [#allocation6], 64
        $region60: #{tpu_custom_call.1} parent=55 // pred_fallthru
          _
        // Predicated region
        $region61: #{tpu_custom_call.1} parent=55 // pred_check
          %p347 = pneg %p165
        $region62: #{tpu_custom_call.1} parent=55 // pred_check_branch
          %349 = sbr.rel (%p347) target = $region64
        $region63: #{tpu_custom_call.1} parent=55 // pred_region
          %350 = dma.done [#allocation9], 2048
        $region64: #{tpu_custom_call.1} parent=55 // pred_fallthru
          _
        // Predicated region
        $region65: #{tpu_custom_call.1} parent=55 // pred_check
          %p351 = pneg %p207
        $region66: #{tpu_custom_call.1} parent=55 // pred_check_branch
          %353 = sbr.rel (%p351) target = $region68
        $region67: #{tpu_custom_call.1} parent=55 // pred_region
          %354 = dma.done [#allocation9], 6144
        $region68: #{tpu_custom_call.1} parent=55 // pred_fallthru
          _
        %p355 = scmp.lt.s32.totalorder %s29, 3
        %s356 = scalar_select %p355, %s29, 3
        %p357 = scmp.lt.s32.totalorder %s30, 1
        %s358 = scalar_select %p357, %s30, 1
        %s359 = smul.addr %s356, 2
        %s360 = sadd.s32 %s358, %s359
        %s361 = smul.addr %s360, 4
        %s362 = scalar_lea.vmem %s0, %s361
        %p363 = pneg %p60
        %p364 = pneg %p57
        %p365 = pneg %p81
        %p366 = pneg %p78
        %p367 = pneg %p102
        %p368 = pneg %p99
        %p369 = pneg %p123
        %p370 = pneg %p120
        %p371 = pneg %p144
        %p372 = pneg %p141
        %p373 = pneg %p165
        %p374 = pneg %p162
        %p375 = pneg %p186
        %p376 = pneg %p183
        %p377 = pneg %p207
        %p378 = pneg %p204
        %p379 = pneg %p228
        %p380 = pneg %p225
        %p381 = pneg %p254
        %p382 = pneg %p251
        %s383 = sand.u32 %s241, 1
        %s384 = scalar_lea.sflag [#allocation7], %s383
        %s385 = sand.u32 %s241, 1
        %s386 = scalar_lea.vmem [#allocation11], %s385
        %p387 = scmp.lt.s32.totalorder %s29, 3
        %s388 = scalar_select %p387, %s29, 3
        %p389 = scmp.lt.s32.totalorder %s30, 1
        %s390 = scalar_select %p389, %s30, 1
        %s391 = smul.addr %s388, 2
        %s392 = sadd.s32 %s390, %s391
        %s393 = smul.addr %s392, 4
        %s394 = scalar_lea.vmem %s0, %s393
        %p395 = scmp.eq.s32.totalorder %s30, 0
        // Predicated region
        $region69: #{tpu_custom_call.1} parent=55 // pred_check
          %p396 = pneg %p395
        $region70: #{tpu_custom_call.1} parent=55 // pred_check_branch
          %398 = sbr.rel (%p396) target = $region72
        $region71: #{tpu_custom_call.1} parent=55 // pred_region
          %399 = vst [vmem:[#allocation2] sm:$0x1] 0.0
          %400 = vst [vmem:[#allocation3] sm:$0x1] 0.0
          %401 = vst [vmem:[#allocation4] sm:$0x1] 0.0
        $region72: #{tpu_custom_call.1} parent=55 // pred_fallthru
          _
        %v402 = vld [vmem:[%s394] sm:$0x7]
        %v403 = vld [vmem:[#allocation5] sm:$0x7]
        %v404 = vld [vmem:[%s2] sm:$0x1]
        %v406 = vlaneseq
        %v407 = vshrl.u32 %v406, 7
        %v408 = vsub.s32 0, %v407
        %v409 = vrot.slane %v404, %v408
        %411 = vxpose.xlu0.b32.start [1/16] %v402, 128
        %412 = vxpose.xlu0.b32.cont [2/16] 0.0, 128
        %413 = vxpose.xlu0.b32.cont [3/16] 0.0, 128
        %414 = vxpose.xlu0.b32.cont [4/16] 0.0, 128
        %415 = vxpose.xlu0.b32.cont [5/16] 0.0, 128
        %416 = vxpose.xlu0.b32.cont [6/16] 0.0, 128
        %417 = vxpose.xlu0.b32.cont [7/16] 0.0, 128
        %418 = vxpose.xlu0.b32.cont [8/16] 0.0, 128
        %419 = vxpose.xlu0.b32.cont [9/16] 0.0, 128
        %420 = vxpose.xlu0.b32.cont [10/16] 0.0, 128
        %421 = vxpose.xlu0.b32.cont [11/16] 0.0, 128
        %422 = vxpose.xlu0.b32.cont [12/16] 0.0, 128
        %423 = vxpose.xlu0.b32.cont [13/16] 0.0, 128
        %424 = vxpose.xlu0.b32.cont [14/16] 0.0, 128
        %425 = vxpose.xlu0.b32.cont [15/16] 0.0, 128
        %426 = vxpose.xlu0.b32.end [16/16] 0.0, 128
        %v427 = vpop.trf.xlu0
        %v428 = vpop.trf.xlu0
        %v429 = vpop.trf.xlu0
        %v430 = vpop.trf.xlu0
        %v431 = vpop.trf.xlu0
        %v432 = vpop.trf.xlu0
        %v433 = vpop.trf.xlu0
        %v434 = vpop.trf.xlu0
        %v435 = vpop.trf.xlu0
        %v436 = vpop.trf.xlu0
        %v437 = vpop.trf.xlu0
        %v438 = vpop.trf.xlu0
        %v439 = vpop.trf.xlu0
        %v440 = vpop.trf.xlu0
        %v441 = vpop.trf.xlu0
        %v442 = vpop.trf.xlu0
        %vm443 = vcmask 23552
        %v445 = vsel %vm443, %v427, 0
        %v448 = vsel %vm443, %v428, 0
        %v451 = vsel %vm443, %v429, 0
        %v454 = vsel %vm443, %v430, 0
        %v457 = vsel %vm443, %v431, 0
        %v460 = vsel %vm443, %v432, 0
        %v463 = vsel %vm443, %v433, 0
        %v466 = vsel %vm443, %v434, 0
        %v469 = vsel %vm443, %v435, 0
        %v472 = vsel %vm443, %v436, 0
        %v475 = vsel %vm443, %v437, 0
        %v478 = vsel %vm443, %v438, 0
        %v481 = vsel %vm443, %v439, 0
        %v484 = vsel %vm443, %v440, 0
        %v487 = vsel %vm443, %v441, 0
        %v490 = vsel %vm443, %v442, 0
        %vm492 = vcmask 1042432
        %v494 = vsel %vm492, %v403, 0
        %496 = vmatprep.subr.mxu0 0.0
        %497 = vmatpush1.msra.mxu0 %v494
        %498 = vmatprep.subr.mxu0 0.0
        %499 = vmatpush1.msra.mxu0 0.0
        %500 = vmatprep.subr.mxu0 0.0
        %501 = vmatpush1.msra.mxu0 0.0
        %502 = vmatprep.subr.mxu0 0.0
        %503 = vmatpush1.msra.mxu0 0.0
        %504 = vmatprep.subr.mxu0 0.0
        %505 = vmatpush1.msra.mxu0 0.0
        %506 = vmatprep.subr.mxu0 0.0
        %507 = vmatpush1.msra.mxu0 0.0
        %508 = vmatprep.subr.mxu0 0.0
        %509 = vmatpush1.msra.mxu0 0.0
        %510 = vmatprep.subr.mxu0 0.0
        %511 = vmatpush1.msra.mxu0 0.0
        %512 = vmatprep.subr.mxu0 0.0
        %513 = vmatpush1.msra.mxu0 0.0
        %514 = vmatprep.subr.mxu0 0.0
        %515 = vmatpush1.msra.mxu0 0.0
        %516 = vmatprep.subr.mxu0 0.0
        %517 = vmatpush1.msra.mxu0 0.0
        %518 = vmatprep.subr.mxu0 0.0
        %519 = vmatpush1.msra.mxu0 0.0
        %520 = vmatprep.subr.mxu0 0.0
        %521 = vmatpush1.msra.mxu0 0.0
        %522 = vmatprep.subr.mxu0 0.0
        %523 = vmatpush1.msra.mxu0 0.0
        %524 = vmatprep.subr.mxu0 0.0
        %525 = vmatpush1.msra.mxu0 0.0
        %526 = vmatprep.subr.mxu0 0.0
        %527 = vmatpush1.msra.mxu0 0.0
        %528 = vmatprep.subr.mxu0 0.0
        %529 = vmatpush1.msra.mxu0 0.0
        %530 = vmatprep.subr.mxu0 0.0
        %531 = vmatpush1.msra.mxu0 0.0
        %532 = vmatprep.subr.mxu0 0.0
        %533 = vmatpush1.msra.mxu0 0.0
        %534 = vmatprep.subr.mxu0 0.0
        %535 = vmatpush1.msra.mxu0 0.0
        %536 = vmatprep.subr.mxu0 0.0
        %537 = vmatpush1.msra.mxu0 0.0
        %538 = vmatprep.subr.mxu0 0.0
        %539 = vmatpush1.msra.mxu0 0.0
        %540 = vmatprep.subr.mxu0 0.0
        %541 = vmatpush1.msra.mxu0 0.0
        %542 = vmatprep.subr.mxu0 0.0
        %543 = vmatpush1.msra.mxu0 0.0
        %544 = vmatprep.subr.mxu0 0.0
        %545 = vmatpush1.msra.mxu0 0.0
        %546 = vmatprep.subr.mxu0 0.0
        %547 = vmatpush1.msra.mxu0 0.0
        %548 = vmatprep.subr.mxu0 0.0
        %549 = vmatpush1.msra.mxu0 0.0
        %550 = vmatprep.subr.mxu0 0.0
        %551 = vmatpush1.msra.mxu0 0.0
        %552 = vmatprep.subr.mxu0 0.0
        %553 = vmatpush1.msra.mxu0 0.0
        %554 = vmatprep.subr.mxu0 0.0
        %555 = vmatpush1.msra.mxu0 0.0
        %556 = vmatprep.subr.mxu0 0.0
        %557 = vmatpush1.msra.mxu0 0.0
        %558 = vmatprep.subr.mxu0 0.0
        %559 = vmatpush1.msra.mxu0 0.0
        %560 = vmatprep.mubr.f32.mxu0 0.0
        %561 = vmatmul.mubr.f32.gmra.mrb[0].mxu0 %v445
        %v562 = vpop.f32.mrb[0].mxu0
        %v563 = vadd.f32 %v409, %v562
        %v564 = vpop.f32.mrb[0].mxu0
        %565 = vmatprep.mubr.f32.mxu0 0.0
        %566 = vmatmul.mubr.f32.gmra.mrb[0].mxu0 %v448
        %v567 = vpop.f32.mrb[0].mxu0
        %v568 = vadd.f32 %v409, %v567
        %v569 = vpop.f32.mrb[0].mxu0
        %570 = vmatprep.mubr.f32.mxu0 0.0
        %571 = vmatmul.mubr.f32.gmra.mrb[0].mxu0 %v451
        %v572 = vpop.f32.mrb[0].mxu0
        %v573 = vadd.f32 %v409, %v572
        %v574 = vpop.f32.mrb[0].mxu0
        %575 = vmatprep.mubr.f32.mxu0 0.0
        %576 = vmatmul.mubr.f32.gmra.mrb[0].mxu0 %v454
        %v577 = vpop.f32.mrb[0].mxu0
        %v578 = vadd.f32 %v409, %v577
        %v579 = vpop.f32.mrb[0].mxu0
        %580 = vmatprep.mubr.f32.mxu0 0.0
        %581 = vmatmul.mubr.f32.gmra.mrb[0].mxu0 %v457
        %v582 = vpop.f32.mrb[0].mxu0
        %v583 = vadd.f32 %v409, %v582
        %v584 = vpop.f32.mrb[0].mxu0
        %585 = vmatprep.mubr.f32.mxu0 0.0
        %586 = vmatmul.mubr.f32.gmra.mrb[0].mxu0 %v460
        %v587 = vpop.f32.mrb[0].mxu0
        %v588 = vadd.f32 %v409, %v587
        %v589 = vpop.f32.mrb[0].mxu0
        %590 = vmatprep.mubr.f32.mxu0 0.0
        %591 = vmatmul.mubr.f32.gmra.mrb[0].mxu0 %v463
        %v592 = vpop.f32.mrb[0].mxu0
        %v593 = vadd.f32 %v409, %v592
        %v594 = vpop.f32.mrb[0].mxu0
        %595 = vmatprep.mubr.f32.mxu0 0.0
        %596 = vmatmul.mubr.f32.gmra.mrb[0].mxu0 %v466
        %v597 = vpop.f32.mrb[0].mxu0
        %v598 = vadd.f32 %v409, %v597
        %v599 = vpop.f32.mrb[0].mxu0
        %600 = vmatprep.mubr.f32.mxu0 0.0
        %601 = vmatmul.mubr.f32.gmra.mrb[0].mxu0 %v469
        %v602 = vpop.f32.mrb[0].mxu0
        %v603 = vadd.f32 %v409, %v602
        %v604 = vpop.f32.mrb[0].mxu0
        %605 = vmatprep.mubr.f32.mxu0 0.0
        %606 = vmatmul.mubr.f32.gmra.mrb[0].mxu0 %v472
        %v607 = vpop.f32.mrb[0].mxu0
        %v608 = vadd.f32 %v409, %v607
        %v609 = vpop.f32.mrb[0].mxu0
        %610 = vmatprep.mubr.f32.mxu0 0.0
        %611 = vmatmul.mubr.f32.gmra.mrb[0].mxu0 %v475
        %v612 = vpop.f32.mrb[0].mxu0
        %v613 = vadd.f32 %v409, %v612
        %v614 = vpop.f32.mrb[0].mxu0
        %615 = vmatprep.mubr.f32.mxu0 0.0
        %616 = vmatmul.mubr.f32.gmra.mrb[0].mxu0 %v478
        %v617 = vpop.f32.mrb[0].mxu0
        %v618 = vadd.f32 %v409, %v617
        %v619 = vpop.f32.mrb[0].mxu0
        %620 = vmatprep.mubr.f32.mxu0 0.0
        %621 = vmatmul.mubr.f32.gmra.mrb[0].mxu0 %v481
        %v622 = vpop.f32.mrb[0].mxu0
        %v623 = vadd.f32 %v409, %v622
        %v624 = vpop.f32.mrb[0].mxu0
        %625 = vmatprep.mubr.f32.mxu0 0.0
        %626 = vmatmul.mubr.f32.gmra.mrb[0].mxu0 %v484
        %v627 = vpop.f32.mrb[0].mxu0
        %v628 = vadd.f32 %v409, %v627
        %v629 = vpop.f32.mrb[0].mxu0
        %630 = vmatprep.mubr.f32.mxu0 0.0
        %631 = vmatmul.mubr.f32.gmra.mrb[0].mxu0 %v487
        %v632 = vpop.f32.mrb[0].mxu0
        %v633 = vadd.f32 %v409, %v632
        %v634 = vpop.f32.mrb[0].mxu0
        %635 = vmatprep.mubr.f32.mxu0 0.0
        %636 = vmatmul.mubr.f32.gmra.mrb[0].mxu0 %v490
        %v637 = vpop.f32.mrb[0].mxu0
        %v638 = vadd.f32 %v409, %v637
        %v639 = vpop.f32.mrb[0].mxu0
        %640 = vdwg.mxu0
        %v641 = vmax.f32 %v563, 0.0
        %v642 = vmax.f32 %v568, 0.0
        %v643 = vmax.f32 %v573, 0.0
        %v644 = vmax.f32 %v578, 0.0
        %v645 = vmax.f32 %v583, 0.0
        %v646 = vmax.f32 %v588, 0.0
        %v647 = vmax.f32 %v593, 0.0
        %v648 = vmax.f32 %v598, 0.0
        %v649 = vmax.f32 %v603, 0.0
        %v650 = vmax.f32 %v608, 0.0
        %v651 = vmax.f32 %v613, 0.0
        %v652 = vmax.f32 %v618, 0.0
        %v653 = vmax.f32 %v623, 0.0
        %v654 = vmax.f32 %v628, 0.0
        %v655 = vmax.f32 %v633, 0.0
        %v656 = vmax.f32 %v638, 0.0
        %v657 = vld [vmem:[%s3] sm:$0xff]
        %v658 = vld [vmem:[%s3 + $0x8] sm:$0xff]
        %v659 = vld [vmem:[%s3 + $0x10] sm:$0xff]
        %v660 = vld [vmem:[%s3 + $0x18] sm:$0xff]
        %v661 = vld [vmem:[%s3 + $0x20] sm:$0xff]
        %v662 = vld [vmem:[%s3 + $0x28] sm:$0xff]
        %v663 = vld [vmem:[%s3 + $0x30] sm:$0xff]
        %v664 = vld [vmem:[%s3 + $0x38] sm:$0xff]
        %v665 = vld [vmem:[%s4] sm:$0x1]
        %v667 = vlaneseq
        %v668 = vshrl.u32 %v667, 7
        %v669 = vsub.s32 0, %v668
        %v670 = vrot.slane %v665, %v669
        %vm672 = vcmask 523264
        %v674 = vsel %vm672, %v641, 0
        %v677 = vsel %vm672, %v642, 0
        %v680 = vsel %vm672, %v643, 0
        %v683 = vsel %vm672, %v644, 0
        %v686 = vsel %vm672, %v645, 0
        %v689 = vsel %vm672, %v646, 0
        %v692 = vsel %vm672, %v647, 0
        %v695 = vsel %vm672, %v648, 0
        %v698 = vsel %vm672, %v649, 0
        %v701 = vsel %vm672, %v650, 0
        %v704 = vsel %vm672, %v651, 0
        %v707 = vsel %vm672, %v652, 0
        %v710 = vsel %vm672, %v653, 0
        %v713 = vsel %vm672, %v654, 0
        %v716 = vsel %vm672, %v655, 0
        %v719 = vsel %vm672, %v656, 0
        %721 = vmatprep.subr.mxu0 0.0
        %722 = vmatpush1.msra.mxu0 %v657
        %723 = vmatprep.subr.mxu0 0.0
        %724 = vmatpush1.msra.mxu0 %v658
        %725 = vmatprep.subr.mxu0 0.0
        %726 = vmatpush1.msra.mxu0 %v659
        %727 = vmatprep.subr.mxu0 0.0
        %728 = vmatpush1.msra.mxu0 %v660
        %729 = vmatprep.subr.mxu0 0.0
        %730 = vmatpush1.msra.mxu0 %v661
        %731 = vmatprep.subr.mxu0 0.0
        %732 = vmatpush1.msra.mxu0 %v662
        %733 = vmatprep.subr.mxu0 0.0
        %734 = vmatpush1.msra.mxu0 %v663
        %735 = vmatprep.subr.mxu0 0.0
        %736 = vmatpush1.msra.mxu0 %v664
        %737 = vmatprep.subr.mxu0 0.0
        %738 = vmatpush1.msra.mxu0 0.0
        %739 = vmatprep.subr.mxu0 0.0
        %740 = vmatpush1.msra.mxu0 0.0
        %741 = vmatprep.subr.mxu0 0.0
        %742 = vmatpush1.msra.mxu0 0.0
        %743 = vmatprep.subr.mxu0 0.0
        %744 = vmatpush1.msra.mxu0 0.0
        %745 = vmatprep.subr.mxu0 0.0
        %746 = vmatpush1.msra.mxu0 0.0
        %747 = vmatprep.subr.mxu0 0.0
        %748 = vmatpush1.msra.mxu0 0.0
        %749 = vmatprep.subr.mxu0 0.0
        %750 = vmatpush1.msra.mxu0 0.0
        %751 = vmatprep.subr.mxu0 0.0
        %752 = vmatpush1.msra.mxu0 0.0
        %753 = vmatprep.subr.mxu0 0.0
        %754 = vmatpush1.msra.mxu0 0.0
        %755 = vmatprep.subr.mxu0 0.0
        %756 = vmatpush1.msra.mxu0 0.0
        %757 = vmatprep.subr.mxu0 0.0
        %758 = vmatpush1.msra.mxu0 0.0
        %759 = vmatprep.subr.mxu0 0.0
        %760 = vmatpush1.msra.mxu0 0.0
        %761 = vmatprep.subr.mxu0 0.0
        %762 = vmatpush1.msra.mxu0 0.0
        %763 = vmatprep.subr.mxu0 0.0
        %764 = vmatpush1.msra.mxu0 0.0
        %765 = vmatprep.subr.mxu0 0.0
        %766 = vmatpush1.msra.mxu0 0.0
        %767 = vmatprep.subr.mxu0 0.0
        %768 = vmatpush1.msra.mxu0 0.0
        %769 = vmatprep.subr.mxu0 0.0
        %770 = vmatpush1.msra.mxu0 0.0
        %771 = vmatprep.subr.mxu0 0.0
        %772 = vmatpush1.msra.mxu0 0.0
        %773 = vmatprep.subr.mxu0 0.0
        %774 = vmatpush1.msra.mxu0 0.0
        %775 = vmatprep.subr.mxu0 0.0
        %776 = vmatpush1.msra.mxu0 0.0
        %777 = vmatprep.subr.mxu0 0.0
        %778 = vmatpush1.msra.mxu0 0.0
        %779 = vmatprep.subr.mxu0 0.0
        %780 = vmatpush1.msra.mxu0 0.0
        %781 = vmatprep.subr.mxu0 0.0
        %782 = vmatpush1.msra.mxu0 0.0
        %783 = vmatprep.subr.mxu0 0.0
        %784 = vmatpush1.msra.mxu0 0.0
        %785 = vmatprep.mubr.f32.mxu0 0.0
        %786 = vmatmul.mubr.f32.gmra.mrb[0].mxu0 %v674
        %v787 = vpop.f32.mrb[0].mxu0
        %v788 = vadd.f32 %v670, %v787
        %v789 = vpop.f32.mrb[0].mxu0
        %790 = vmatprep.mubr.f32.mxu0 0.0
        %791 = vmatmul.mubr.f32.gmra.mrb[0].mxu0 %v677
        %v792 = vpop.f32.mrb[0].mxu0
        %v793 = vadd.f32 %v670, %v792
        %v794 = vpop.f32.mrb[0].mxu0
        %795 = vmatprep.mubr.f32.mxu0 0.0
        %796 = vmatmul.mubr.f32.gmra.mrb[0].mxu0 %v680
        %v797 = vpop.f32.mrb[0].mxu0
        %v798 = vadd.f32 %v670, %v797
        %v799 = vpop.f32.mrb[0].mxu0
        %800 = vmatprep.mubr.f32.mxu0 0.0
        %801 = vmatmul.mubr.f32.gmra.mrb[0].mxu0 %v683
        %v802 = vpop.f32.mrb[0].mxu0
        %v803 = vadd.f32 %v670, %v802
        %v804 = vpop.f32.mrb[0].mxu0
        %805 = vmatprep.mubr.f32.mxu0 0.0
        %806 = vmatmul.mubr.f32.gmra.mrb[0].mxu0 %v686
        %v807 = vpop.f32.mrb[0].mxu0
        %v808 = vadd.f32 %v670, %v807
        %v809 = vpop.f32.mrb[0].mxu0
        %810 = vmatprep.mubr.f32.mxu0 0.0
        %811 = vmatmul.mubr.f32.gmra.mrb[0].mxu0 %v689
        %v812 = vpop.f32.mrb[0].mxu0
        %v813 = vadd.f32 %v670, %v812
        %v814 = vpop.f32.mrb[0].mxu0
        %815 = vmatprep.mubr.f32.mxu0 0.0
        %816 = vmatmul.mubr.f32.gmra.mrb[0].mxu0 %v692
        %v817 = vpop.f32.mrb[0].mxu0
        %v818 = vadd.f32 %v670, %v817
        %v819 = vpop.f32.mrb[0].mxu0
        %820 = vmatprep.mubr.f32.mxu0 0.0
        %821 = vmatmul.mubr.f32.gmra.mrb[0].mxu0 %v695
        %v822 = vpop.f32.mrb[0].mxu0
        %v823 = vadd.f32 %v670, %v822
        %v824 = vpop.f32.mrb[0].mxu0
        %825 = vmatprep.mubr.f32.mxu0 0.0
        %826 = vmatmul.mubr.f32.gmra.mrb[0].mxu0 %v698
        %v827 = vpop.f32.mrb[0].mxu0
        %v828 = vadd.f32 %v670, %v827
        %v829 = vpop.f32.mrb[0].mxu0
        %830 = vmatprep.mubr.f32.mxu0 0.0
        %831 = vmatmul.mubr.f32.gmra.mrb[0].mxu0 %v701
        %v832 = vpop.f32.mrb[0].mxu0
        %v833 = vadd.f32 %v670, %v832
        %v834 = vpop.f32.mrb[0].mxu0
        %835 = vmatprep.mubr.f32.mxu0 0.0
        %836 = vmatmul.mubr.f32.gmra.mrb[0].mxu0 %v704
        %v837 = vpop.f32.mrb[0].mxu0
        %v838 = vadd.f32 %v670, %v837
        %v839 = vpop.f32.mrb[0].mxu0
        %840 = vmatprep.mubr.f32.mxu0 0.0
        %841 = vmatmul.mubr.f32.gmra.mrb[0].mxu0 %v707
        %v842 = vpop.f32.mrb[0].mxu0
        %v843 = vadd.f32 %v670, %v842
        %v844 = vpop.f32.mrb[0].mxu0
        %845 = vmatprep.mubr.f32.mxu0 0.0
        %846 = vmatmul.mubr.f32.gmra.mrb[0].mxu0 %v710
        %v847 = vpop.f32.mrb[0].mxu0
        %v848 = vadd.f32 %v670, %v847
        %v849 = vpop.f32.mrb[0].mxu0
        %850 = vmatprep.mubr.f32.mxu0 0.0
        %851 = vmatmul.mubr.f32.gmra.mrb[0].mxu0 %v713
        %v852 = vpop.f32.mrb[0].mxu0
        %v853 = vadd.f32 %v670, %v852
        %v854 = vpop.f32.mrb[0].mxu0
        %855 = vmatprep.mubr.f32.mxu0 0.0
        %856 = vmatmul.mubr.f32.gmra.mrb[0].mxu0 %v716
        %v857 = vpop.f32.mrb[0].mxu0
        %v858 = vadd.f32 %v670, %v857
        %v859 = vpop.f32.mrb[0].mxu0
        %860 = vmatprep.mubr.f32.mxu0 0.0
        %861 = vmatmul.mubr.f32.gmra.mrb[0].mxu0 %v719
        %v862 = vpop.f32.mrb[0].mxu0
        %v863 = vadd.f32 %v670, %v862
        %v864 = vpop.f32.mrb[0].mxu0
        %865 = vdwg.mxu0
        %v866 = vmax.f32 %v788, 0.0
        %v867 = vmax.f32 %v793, 0.0
        %v868 = vmax.f32 %v798, 0.0
        %v869 = vmax.f32 %v803, 0.0
        %v870 = vmax.f32 %v808, 0.0
        %v871 = vmax.f32 %v813, 0.0
        %v872 = vmax.f32 %v818, 0.0
        %v873 = vmax.f32 %v823, 0.0
        %v874 = vmax.f32 %v828, 0.0
        %v875 = vmax.f32 %v833, 0.0
        %v876 = vmax.f32 %v838, 0.0
        %v877 = vmax.f32 %v843, 0.0
        %v878 = vmax.f32 %v848, 0.0
        %v879 = vmax.f32 %v853, 0.0
        %v880 = vmax.f32 %v858, 0.0
        %v881 = vmax.f32 %v863, 0.0
        %v882 = vld [vmem:[#allocation8] sm:$0xff]
        %v883 = vld [vmem:[#allocation8 + $0x8] sm:$0xff]
        %v884 = vld [vmem:[#allocation8 + $0x10] sm:$0xff]
        %v885 = vld [vmem:[#allocation8 + $0x18] sm:$0xff]
        %v886 = vld [vmem:[#allocation8 + $0x20] sm:$0xff]
        %v887 = vld [vmem:[#allocation8 + $0x28] sm:$0xff]
        %v888 = vld [vmem:[#allocation8 + $0x30] sm:$0xff]
        %v889 = vld [vmem:[#allocation8 + $0x38] sm:$0xff]
        %v890 = vld [vmem:[#allocation8 + $0x40] sm:$0xff]
        %v891 = vld [vmem:[#allocation8 + $0x48] sm:$0xff]
        %v892 = vld [vmem:[#allocation8 + $0x50] sm:$0xff]
        %v893 = vld [vmem:[#allocation8 + $0x58] sm:$0xff]
        %v894 = vld [vmem:[#allocation8 + $0x60] sm:$0xff]
        %v895 = vld [vmem:[#allocation8 + $0x68] sm:$0xff]
        %v896 = vld [vmem:[#allocation8 + $0x70] sm:$0xff]
        %v897 = vld [vmem:[#allocation8 + $0x78] sm:$0xff]
        %v898 = vld [vmem:[%s6] sm:$0x1]
        %v900 = vlaneseq
        %v901 = vshrl.u32 %v900, 7
        %v902 = vsub.s32 0, %v901
        %v903 = vrot.slane %v898, %v902
        %905 = vmatprep.subr.mxu0 0.0
        %906 = vmatpush1.msra.mxu0 %v882
        %907 = vmatprep.subr.mxu0 0.0
        %908 = vmatpush1.msra.mxu0 %v883
        %909 = vmatprep.subr.mxu0 0.0
        %910 = vmatpush1.msra.mxu0 %v884
        %911 = vmatprep.subr.mxu0 0.0
        %912 = vmatpush1.msra.mxu0 %v885
        %913 = vmatprep.subr.mxu0 0.0
        %914 = vmatpush1.msra.mxu0 %v886
        %915 = vmatprep.subr.mxu0 0.0
        %916 = vmatpush1.msra.mxu0 %v887
        %917 = vmatprep.subr.mxu0 0.0
        %918 = vmatpush1.msra.mxu0 %v888
        %919 = vmatprep.subr.mxu0 0.0
        %920 = vmatpush1.msra.mxu0 %v889
        %921 = vmatprep.subr.mxu0 0.0
        %922 = vmatpush1.msra.mxu0 %v890
        %923 = vmatprep.subr.mxu0 0.0
        %924 = vmatpush1.msra.mxu0 %v891
        %925 = vmatprep.subr.mxu0 0.0
        %926 = vmatpush1.msra.mxu0 %v892
        %927 = vmatprep.subr.mxu0 0.0
        %928 = vmatpush1.msra.mxu0 %v893
        %929 = vmatprep.subr.mxu0 0.0
        %930 = vmatpush1.msra.mxu0 %v894
        %931 = vmatprep.subr.mxu0 0.0
        %932 = vmatpush1.msra.mxu0 %v895
        %933 = vmatprep.subr.mxu0 0.0
        %934 = vmatpush1.msra.mxu0 %v896
        %935 = vmatprep.subr.mxu0 0.0
        %936 = vmatpush1.msra.mxu0 %v897
        %937 = vmatprep.subr.mxu0 0.0
        %938 = vmatpush1.msra.mxu0 0.0
        %939 = vmatprep.subr.mxu0 0.0
        %940 = vmatpush1.msra.mxu0 0.0
        %941 = vmatprep.subr.mxu0 0.0
        %942 = vmatpush1.msra.mxu0 0.0
        %943 = vmatprep.subr.mxu0 0.0
        %944 = vmatpush1.msra.mxu0 0.0
        %945 = vmatprep.subr.mxu0 0.0
        %946 = vmatpush1.msra.mxu0 0.0
        %947 = vmatprep.subr.mxu0 0.0
        %948 = vmatpush1.msra.mxu0 0.0
        %949 = vmatprep.subr.mxu0 0.0
        %950 = vmatpush1.msra.mxu0 0.0
        %951 = vmatprep.subr.mxu0 0.0
        %952 = vmatpush1.msra.mxu0 0.0
        %953 = vmatprep.subr.mxu0 0.0
        %954 = vmatpush1.msra.mxu0 0.0
        %955 = vmatprep.subr.mxu0 0.0
        %956 = vmatpush1.msra.mxu0 0.0
        %957 = vmatprep.subr.mxu0 0.0
        %958 = vmatpush1.msra.mxu0 0.0
        %959 = vmatprep.subr.mxu0 0.0
        %960 = vmatpush1.msra.mxu0 0.0
        %961 = vmatprep.subr.mxu0 0.0
        %962 = vmatpush1.msra.mxu0 0.0
        %963 = vmatprep.subr.mxu0 0.0
        %964 = vmatpush1.msra.mxu0 0.0
        %965 = vmatprep.subr.mxu0 0.0
        %966 = vmatpush1.msra.mxu0 0.0
        %967 = vmatprep.subr.mxu0 0.0
        %968 = vmatpush1.msra.mxu0 0.0
        %969 = vmatprep.mubr.f32.mxu0 0.0
        %970 = vmatmul.mubr.f32.gmra.mrb[0].mxu0 %v866
        %v971 = vpop.f32.mrb[0].mxu0
        %v972 = vadd.f32 %v903, %v971
        %v973 = vpop.f32.mrb[0].mxu0
        %974 = vmatprep.mubr.f32.mxu0 0.0
        %975 = vmatmul.mubr.f32.gmra.mrb[0].mxu0 %v867
        %v976 = vpop.f32.mrb[0].mxu0
        %v977 = vadd.f32 %v903, %v976
        %v978 = vpop.f32.mrb[0].mxu0
        %979 = vmatprep.mubr.f32.mxu0 0.0
        %980 = vmatmul.mubr.f32.gmra.mrb[0].mxu0 %v868
        %v981 = vpop.f32.mrb[0].mxu0
        %v982 = vadd.f32 %v903, %v981
        %v983 = vpop.f32.mrb[0].mxu0
        %984 = vmatprep.mubr.f32.mxu0 0.0
        %985 = vmatmul.mubr.f32.gmra.mrb[0].mxu0 %v869
        %v986 = vpop.f32.mrb[0].mxu0
        %v987 = vadd.f32 %v903, %v986
        %v988 = vpop.f32.mrb[0].mxu0
        %989 = vmatprep.mubr.f32.mxu0 0.0
        %990 = vmatmul.mubr.f32.gmra.mrb[0].mxu0 %v870
        %v991 = vpop.f32.mrb[0].mxu0
        %v992 = vadd.f32 %v903, %v991
        %v993 = vpop.f32.mrb[0].mxu0
        %994 = vmatprep.mubr.f32.mxu0 0.0
        %995 = vmatmul.mubr.f32.gmra.mrb[0].mxu0 %v871
        %v996 = vpop.f32.mrb[0].mxu0
        %v997 = vadd.f32 %v903, %v996
        %v998 = vpop.f32.mrb[0].mxu0
        %999 = vmatprep.mubr.f32.mxu0 0.0
        %1000 = vmatmul.mubr.f32.gmra.mrb[0].mxu0 %v872
        %v1001 = vpop.f32.mrb[0].mxu0
        %v1002 = vadd.f32 %v903, %v1001
        %v1003 = vpop.f32.mrb[0].mxu0
        %1004 = vmatprep.mubr.f32.mxu0 0.0
        %1005 = vmatmul.mubr.f32.gmra.mrb[0].mxu0 %v873
        %v1006 = vpop.f32.mrb[0].mxu0
        %v1007 = vadd.f32 %v903, %v1006
        %v1008 = vpop.f32.mrb[0].mxu0
        %1009 = vmatprep.mubr.f32.mxu0 0.0
        %1010 = vmatmul.mubr.f32.gmra.mrb[0].mxu0 %v874
        %v1011 = vpop.f32.mrb[0].mxu0
        %v1012 = vadd.f32 %v903, %v1011
        %v1013 = vpop.f32.mrb[0].mxu0
        %1014 = vmatprep.mubr.f32.mxu0 0.0
        %1015 = vmatmul.mubr.f32.gmra.mrb[0].mxu0 %v875
        %v1016 = vpop.f32.mrb[0].mxu0
        %v1017 = vadd.f32 %v903, %v1016
        %v1018 = vpop.f32.mrb[0].mxu0
        %1019 = vmatprep.mubr.f32.mxu0 0.0
        %1020 = vmatmul.mubr.f32.gmra.mrb[0].mxu0 %v876
        %v1021 = vpop.f32.mrb[0].mxu0
        %v1022 = vadd.f32 %v903, %v1021
        %v1023 = vpop.f32.mrb[0].mxu0
        %1024 = vmatprep.mubr.f32.mxu0 0.0
        %1025 = vmatmul.mubr.f32.gmra.mrb[0].mxu0 %v877
        %v1026 = vpop.f32.mrb[0].mxu0
        %v1027 = vadd.f32 %v903, %v1026
        %v1028 = vpop.f32.mrb[0].mxu0
        %1029 = vmatprep.mubr.f32.mxu0 0.0
        %1030 = vmatmul.mubr.f32.gmra.mrb[0].mxu0 %v878
        %v1031 = vpop.f32.mrb[0].mxu0
        %v1032 = vadd.f32 %v903, %v1031
        %v1033 = vpop.f32.mrb[0].mxu0
        %1034 = vmatprep.mubr.f32.mxu0 0.0
        %1035 = vmatmul.mubr.f32.gmra.mrb[0].mxu0 %v879
        %v1036 = vpop.f32.mrb[0].mxu0
        %v1037 = vadd.f32 %v903, %v1036
        %v1038 = vpop.f32.mrb[0].mxu0
        %1039 = vmatprep.mubr.f32.mxu0 0.0
        %1040 = vmatmul.mubr.f32.gmra.mrb[0].mxu0 %v880
        %v1041 = vpop.f32.mrb[0].mxu0
        %v1042 = vadd.f32 %v903, %v1041
        %v1043 = vpop.f32.mrb[0].mxu0
        %1044 = vmatprep.mubr.f32.mxu0 0.0
        %1045 = vmatmul.mubr.f32.gmra.mrb[0].mxu0 %v881
        %v1046 = vpop.f32.mrb[0].mxu0
        %v1047 = vadd.f32 %v903, %v1046
        %v1048 = vpop.f32.mrb[0].mxu0
        %1049 = vdwg.mxu0
        %v1050 = vmax.f32 %v972, 0.0
        %v1051 = vmax.f32 %v977, 0.0
        %v1052 = vmax.f32 %v982, 0.0
        %v1053 = vmax.f32 %v987, 0.0
        %v1054 = vmax.f32 %v992, 0.0
        %v1055 = vmax.f32 %v997, 0.0
        %v1056 = vmax.f32 %v1002, 0.0
        %v1057 = vmax.f32 %v1007, 0.0
        %v1058 = vmax.f32 %v1012, 0.0
        %v1059 = vmax.f32 %v1017, 0.0
        %v1060 = vmax.f32 %v1022, 0.0
        %v1061 = vmax.f32 %v1027, 0.0
        %v1062 = vmax.f32 %v1032, 0.0
        %v1063 = vmax.f32 %v1037, 0.0
        %v1064 = vmax.f32 %v1042, 0.0
        %v1065 = vmax.f32 %v1047, 0.0
        %v1066 = vld [vmem:[#allocation2] sm:$0x1]
        %v1067 = vmax.f32 %v1050, %v1054
        %v1068 = vmax.f32 %v1051, %v1055
        %v1069 = vmax.f32 %v1052, %v1056
        %v1070 = vmax.f32 %v1053, %v1057
        %v1071 = vmax.f32 %v1067, %v1058
        %v1072 = vmax.f32 %v1068, %v1059
        %v1073 = vmax.f32 %v1069, %v1060
        %v1074 = vmax.f32 %v1070, %v1061
        %v1075 = vmax.f32 %v1071, %v1062
        %v1076 = vmax.f32 %v1072, %v1063
        %v1077 = vmax.f32 %v1073, %v1064
        %v1078 = vmax.f32 %v1074, %v1065
        %v1079 = vmax.f32 %v1075, %v1076
        %v1080 = vmax.f32 %v1077, %v1078
        %v1081 = vmax.f32 %v1079, %v1080
        %v1082 = vrot.slane %v1081, 4
        %v1083 = vmax.f32 %v1081, %v1082
        %v1084 = vrot.slane %v1083, 2
        %v1085 = vmax.f32 %v1083, %v1084
        %v1086 = vrot.slane %v1085, 1
        %v1087 = vmax.f32 %v1085, %v1086
        %v1088 = vmax.f32 %v1066, %v1087
        %1089 = vst [vmem:[#allocation2] sm:$0x1] %v1088
        %v1090 = vld [vmem:[#allocation3] sm:$0x1]
        %1091 = vmatprep.subr.mxu0 0.0
        %1092 = vmatpush1.msra.mxu0 %v1050
        %1093 = vmatprep.subr.mxu0 0.0
        %1094 = vmatpush1.msra.mxu0 %v1051
        %1095 = vmatprep.subr.mxu0 0.0
        %1096 = vmatpush1.msra.mxu0 %v1052
        %1097 = vmatprep.subr.mxu0 0.0
        %1098 = vmatpush1.msra.mxu0 %v1053
        %1099 = vmatprep.subr.mxu0 0.0
        %1100 = vmatpush1.msra.mxu0 %v1054
        %1101 = vmatprep.subr.mxu0 0.0
        %1102 = vmatpush1.msra.mxu0 %v1055
        %1103 = vmatprep.subr.mxu0 0.0
        %1104 = vmatpush1.msra.mxu0 %v1056
        %1105 = vmatprep.subr.mxu0 0.0
        %1106 = vmatpush1.msra.mxu0 %v1057
        %1107 = vmatprep.subr.mxu0 0.0
        %1108 = vmatpush1.msra.mxu0 %v1058
        %1109 = vmatprep.subr.mxu0 0.0
        %1110 = vmatpush1.msra.mxu0 %v1059
        %1111 = vmatprep.subr.mxu0 0.0
        %1112 = vmatpush1.msra.mxu0 %v1060
        %1113 = vmatprep.subr.mxu0 0.0
        %1114 = vmatpush1.msra.mxu0 %v1061
        %1115 = vmatprep.subr.mxu0 0.0
        %1116 = vmatpush1.msra.mxu0 %v1062
        %1117 = vmatprep.subr.mxu0 0.0
        %1118 = vmatpush1.msra.mxu0 %v1063
        %1119 = vmatprep.subr.mxu0 0.0
        %1120 = vmatpush1.msra.mxu0 %v1064
        %1121 = vmatprep.subr.mxu0 0.0
        %1122 = vmatpush1.msra.mxu0 %v1065
        %1123 = vmatprep.subr.mxu0 0.0
        %1124 = vmatpush1.msra.mxu0 0.0
        %1125 = vmatprep.subr.mxu0 0.0
        %1126 = vmatpush1.msra.mxu0 0.0
        %1127 = vmatprep.subr.mxu0 0.0
        %1128 = vmatpush1.msra.mxu0 0.0
        %1129 = vmatprep.subr.mxu0 0.0
        %1130 = vmatpush1.msra.mxu0 0.0
        %1131 = vmatprep.subr.mxu0 0.0
        %1132 = vmatpush1.msra.mxu0 0.0
        %1133 = vmatprep.subr.mxu0 0.0
        %1134 = vmatpush1.msra.mxu0 0.0
        %1135 = vmatprep.subr.mxu0 0.0
        %1136 = vmatpush1.msra.mxu0 0.0
        %1137 = vmatprep.subr.mxu0 0.0
        %1138 = vmatpush1.msra.mxu0 0.0
        %1139 = vmatprep.subr.mxu0 0.0
        %1140 = vmatpush1.msra.mxu0 0.0
        %1141 = vmatprep.subr.mxu0 0.0
        %1142 = vmatpush1.msra.mxu0 0.0
        %1143 = vmatprep.subr.mxu0 0.0
        %1144 = vmatpush1.msra.mxu0 0.0
        %1145 = vmatprep.subr.mxu0 0.0
        %1146 = vmatpush1.msra.mxu0 0.0
        %1147 = vmatprep.subr.mxu0 0.0
        %1148 = vmatpush1.msra.mxu0 0.0
        %1149 = vmatprep.subr.mxu0 0.0
        %1150 = vmatpush1.msra.mxu0 0.0
        %1151 = vmatprep.subr.mxu0 0.0
        %1152 = vmatpush1.msra.mxu0 0.0
        %1153 = vmatprep.subr.mxu0 0.0
        %1154 = vmatpush1.msra.mxu0 0.0
        %1155 = vmatprep.mubr.f32.mxu0 0.0
        %1156 = vmatmul.mubr.f32.gmra.mrb[0].mxu0 1.0
        %v1157 = vpop.f32.mrb[0].mxu0
        %v1158 = vadd.f32 0.0, %v1157
        %v1159 = vpop.f32.mrb[0].mxu0
        %1160 = vdwg.mxu0
        %v1161 = vadd.f32 %v1090, %v1158
        %1162 = vst [vmem:[#allocation3] sm:$0x1] %v1161
        %v1163 = vld [vmem:[#allocation4] sm:$0x1]
        %v1164 = vmul.f32 %v1050, %v1050
        %v1165 = vmul.f32 %v1051, %v1051
        %v1166 = vmul.f32 %v1052, %v1052
        %v1167 = vmul.f32 %v1053, %v1053
        %v1168 = vmul.f32 %v1054, %v1054
        %v1169 = vmul.f32 %v1055, %v1055
        %v1170 = vmul.f32 %v1056, %v1056
        %v1171 = vmul.f32 %v1057, %v1057
        %v1172 = vmul.f32 %v1058, %v1058
        %v1173 = vmul.f32 %v1059, %v1059
        %v1174 = vmul.f32 %v1060, %v1060
        %v1175 = vmul.f32 %v1061, %v1061
        %v1176 = vmul.f32 %v1062, %v1062
        %v1177 = vmul.f32 %v1063, %v1063
        %v1178 = vmul.f32 %v1064, %v1064
        %v1179 = vmul.f32 %v1065, %v1065
        %v1180 = vmul.f32 %v1164, %v1050
        %v1181 = vmul.f32 %v1165, %v1051
        %v1182 = vmul.f32 %v1166, %v1052
        %v1183 = vmul.f32 %v1167, %v1053
        %v1184 = vmul.f32 %v1168, %v1054
        %v1185 = vmul.f32 %v1169, %v1055
        %v1186 = vmul.f32 %v1170, %v1056
        %v1187 = vmul.f32 %v1171, %v1057
        %v1188 = vmul.f32 %v1172, %v1058
        %v1189 = vmul.f32 %v1173, %v1059
        %v1190 = vmul.f32 %v1174, %v1060
        %v1191 = vmul.f32 %v1175, %v1061
        %v1192 = vmul.f32 %v1176, %v1062
        %v1193 = vmul.f32 %v1177, %v1063
        %v1194 = vmul.f32 %v1178, %v1064
        %v1195 = vmul.f32 %v1179, %v1065
        %1196 = vmatprep.subr.mxu0 0.0
        %1197 = vmatpush1.msra.mxu0 %v1180
        %1198 = vmatprep.subr.mxu0 0.0
        %1199 = vmatpush1.msra.mxu0 %v1181
        %1200 = vmatprep.subr.mxu0 0.0
        %1201 = vmatpush1.msra.mxu0 %v1182
        %1202 = vmatprep.subr.mxu0 0.0
        %1203 = vmatpush1.msra.mxu0 %v1183
        %1204 = vmatprep.subr.mxu0 0.0
        %1205 = vmatpush1.msra.mxu0 %v1184
        %1206 = vmatprep.subr.mxu0 0.0
        %1207 = vmatpush1.msra.mxu0 %v1185
        %1208 = vmatprep.subr.mxu0 0.0
        %1209 = vmatpush1.msra.mxu0 %v1186
        %1210 = vmatprep.subr.mxu0 0.0
        %1211 = vmatpush1.msra.mxu0 %v1187
        %1212 = vmatprep.subr.mxu0 0.0
        %1213 = vmatpush1.msra.mxu0 %v1188
        %1214 = vmatprep.subr.mxu0 0.0
        %1215 = vmatpush1.msra.mxu0 %v1189
        %1216 = vmatprep.subr.mxu0 0.0
        %1217 = vmatpush1.msra.mxu0 %v1190
        %1218 = vmatprep.subr.mxu0 0.0
        %1219 = vmatpush1.msra.mxu0 %v1191
        %1220 = vmatprep.subr.mxu0 0.0
        %1221 = vmatpush1.msra.mxu0 %v1192
        %1222 = vmatprep.subr.mxu0 0.0
        %1223 = vmatpush1.msra.mxu0 %v1193
        %1224 = vmatprep.subr.mxu0 0.0
        %1225 = vmatpush1.msra.mxu0 %v1194
        %1226 = vmatprep.subr.mxu0 0.0
        %1227 = vmatpush1.msra.mxu0 %v1195
        %1228 = vmatprep.subr.mxu0 0.0
        %1229 = vmatpush1.msra.mxu0 0.0
        %1230 = vmatprep.subr.mxu0 0.0
        %1231 = vmatpush1.msra.mxu0 0.0
        %1232 = vmatprep.subr.mxu0 0.0
        %1233 = vmatpush1.msra.mxu0 0.0
        %1234 = vmatprep.subr.mxu0 0.0
        %1235 = vmatpush1.msra.mxu0 0.0
        %1236 = vmatprep.subr.mxu0 0.0
        %1237 = vmatpush1.msra.mxu0 0.0
        %1238 = vmatprep.subr.mxu0 0.0
        %1239 = vmatpush1.msra.mxu0 0.0
        %1240 = vmatprep.subr.mxu0 0.0
        %1241 = vmatpush1.msra.mxu0 0.0
        %1242 = vmatprep.subr.mxu0 0.0
        %1243 = vmatpush1.msra.mxu0 0.0
        %1244 = vmatprep.subr.mxu0 0.0
        %1245 = vmatpush1.msra.mxu0 0.0
        %1246 = vmatprep.subr.mxu0 0.0
        %1247 = vmatpush1.msra.mxu0 0.0
        %1248 = vmatprep.subr.mxu0 0.0
        %1249 = vmatpush1.msra.mxu0 0.0
        %1250 = vmatprep.subr.mxu0 0.0
        %1251 = vmatpush1.msra.mxu0 0.0
        %1252 = vmatprep.subr.mxu0 0.0
        %1253 = vmatpush1.msra.mxu0 0.0
        %1254 = vmatprep.subr.mxu0 0.0
        %1255 = vmatpush1.msra.mxu0 0.0
        %1256 = vmatprep.subr.mxu0 0.0
        %1257 = vmatpush1.msra.mxu0 0.0
        %1258 = vmatprep.subr.mxu0 0.0
        %1259 = vmatpush1.msra.mxu0 0.0
        %1260 = vmatprep.mubr.f32.mxu0 0.0
        %1261 = vmatmul.mubr.f32.gmra.mrb[0].mxu0 1.0
        %v1262 = vpop.f32.mrb[0].mxu0
        %v1263 = vadd.f32 0.0, %v1262
        %v1264 = vpop.f32.mrb[0].mxu0
        %1265 = vdwg.mxu0
        %v1266 = vadd.f32 %v1163, %v1263
        %1267 = vst [vmem:[#allocation4] sm:$0x1] %v1266
        %p1268 = scmp.eq.s32.totalorder %s30, 1
        // Predicated region
        $region73: #{tpu_custom_call.1} parent=55 // pred_check
          %p1269 = pneg %p1268
        $region74: #{tpu_custom_call.1} parent=55 // pred_check_branch
          %1271 = sbr.rel (%p1269) target = $region76
        $region75: #{tpu_custom_call.1} parent=55 // pred_region
          %v1272 = vld [vmem:[#allocation2] sm:$0x1]
          %v1273 = vld [vmem:[#allocation3] sm:$0x1]
          %v1274 = vmul.f32 %v1273, 0.00390625
          %v1275 = vld [vmem:[#allocation4] sm:$0x1]
          %v1276 = vmul.f32 %v1275, 0.00390625
          %v1277 = vadd.f32 %v1276, 1e-12
          %v1278 = vlog2.pop %v1277
          %v1279 = vmul.f32 %v1278, 0.6931472
          %v1280 = vmul.f32 %v1279, 0.33333334
          %v1281 = vmul.f32 %v1280, 1.442695
          %v1282 = vpow.pop %v1281
          %v1283 = vld [vmem:[#allocation10] sm:$0xff]
          %v1284 = vld [vmem:[#allocation10 + $0x8] sm:$0xff]
          %v1285 = vld [vmem:[#allocation10 + $0x10] sm:$0xff]
          %v1286 = vld [vmem:[#allocation10 + $0x18] sm:$0xff]
          %v1287 = vld [vmem:[#allocation10 + $0x20] sm:$0xff]
          %v1288 = vld [vmem:[#allocation10 + $0x28] sm:$0xff]
          %v1289 = vld [vmem:[#allocation10 + $0x30] sm:$0xff]
          %v1290 = vld [vmem:[#allocation10 + $0x38] sm:$0xff]
          %v1291 = vld [vmem:[#allocation10 + $0x40] sm:$0xff]
          %v1292 = vld [vmem:[#allocation10 + $0x48] sm:$0xff]
          %v1293 = vld [vmem:[#allocation10 + $0x50] sm:$0xff]
          %v1294 = vld [vmem:[#allocation10 + $0x58] sm:$0xff]
          %v1295 = vld [vmem:[#allocation10 + $0x60] sm:$0xff]
          %v1296 = vld [vmem:[#allocation10 + $0x68] sm:$0xff]
          %v1297 = vld [vmem:[#allocation10 + $0x70] sm:$0xff]
          %v1298 = vld [vmem:[#allocation10 + $0x78] sm:$0xff]
          %v1299 = vld [vmem:[#allocation10 + $0x80] sm:$0xff]
          %v1300 = vld [vmem:[#allocation10 + $0x88] sm:$0xff]
          %v1301 = vld [vmem:[#allocation10 + $0x90] sm:$0xff]
          %v1302 = vld [vmem:[#allocation10 + $0x98] sm:$0xff]
          %v1303 = vld [vmem:[#allocation10 + $0xa0] sm:$0xff]
          %v1304 = vld [vmem:[#allocation10 + $0xa8] sm:$0xff]
          %v1305 = vld [vmem:[#allocation10 + $0xb0] sm:$0xff]
          %v1306 = vld [vmem:[#allocation10 + $0xb8] sm:$0xff]
          %v1307 = vld [vmem:[#allocation10 + $0xc0] sm:$0xff]
          %v1308 = vld [vmem:[#allocation10 + $0xc8] sm:$0xff]
          %v1309 = vld [vmem:[#allocation10 + $0xd0] sm:$0xff]
          %v1310 = vld [vmem:[#allocation10 + $0xd8] sm:$0xff]
          %v1311 = vld [vmem:[#allocation10 + $0xe0] sm:$0xff]
          %v1312 = vld [vmem:[#allocation10 + $0xe8] sm:$0xff]
          %v1313 = vld [vmem:[#allocation10 + $0xf0] sm:$0xff]
          %v1314 = vld [vmem:[#allocation10 + $0xf8] sm:$0xff]
          %v1315 = vld [vmem:[#allocation10 + $0x100] sm:$0xff]
          %v1316 = vld [vmem:[#allocation10 + $0x108] sm:$0xff]
          %v1317 = vld [vmem:[#allocation10 + $0x110] sm:$0xff]
          %v1318 = vld [vmem:[#allocation10 + $0x118] sm:$0xff]
          %v1319 = vld [vmem:[#allocation10 + $0x120] sm:$0xff]
          %v1320 = vld [vmem:[#allocation10 + $0x128] sm:$0xff]
          %v1321 = vld [vmem:[#allocation10 + $0x130] sm:$0xff]
          %v1322 = vld [vmem:[#allocation10 + $0x138] sm:$0xff]
          %v1323 = vld [vmem:[#allocation10 + $0x140] sm:$0xff]
          %v1324 = vld [vmem:[#allocation10 + $0x148] sm:$0xff]
          %v1325 = vld [vmem:[#allocation10 + $0x150] sm:$0xff]
          %v1326 = vld [vmem:[#allocation10 + $0x158] sm:$0xff]
          %v1327 = vld [vmem:[#allocation10 + $0x160] sm:$0xff]
          %v1328 = vld [vmem:[#allocation10 + $0x168] sm:$0xff]
          %v1329 = vld [vmem:[#allocation10 + $0x170] sm:$0xff]
          %v1330 = vld [vmem:[#allocation10 + $0x178] sm:$0xff]
          %v1331 = vld [vmem:[%s8] sm:$0x1]
          %1332 = vmatprep.subr.mxu0 0.0
          %1333 = vmatpush1.msra.mxu0 %v1283
          %1334 = vmatprep.subr.mxu0 0.0
          %1335 = vmatpush1.msra.mxu0 %v1284
          %1336 = vmatprep.subr.mxu0 0.0
          %1337 = vmatpush1.msra.mxu0 %v1285
          %1338 = vmatprep.subr.mxu0 0.0
          %1339 = vmatpush1.msra.mxu0 %v1286
          %1340 = vmatprep.subr.mxu0 0.0
          %1341 = vmatpush1.msra.mxu0 %v1287
          %1342 = vmatprep.subr.mxu0 0.0
          %1343 = vmatpush1.msra.mxu0 %v1288
          %1344 = vmatprep.subr.mxu0 0.0
          %1345 = vmatpush1.msra.mxu0 %v1289
          %1346 = vmatprep.subr.mxu0 0.0
          %1347 = vmatpush1.msra.mxu0 %v1290
          %1348 = vmatprep.subr.mxu0 0.0
          %1349 = vmatpush1.msra.mxu0 %v1291
          %1350 = vmatprep.subr.mxu0 0.0
          %1351 = vmatpush1.msra.mxu0 %v1292
          %1352 = vmatprep.subr.mxu0 0.0
          %1353 = vmatpush1.msra.mxu0 %v1293
          %1354 = vmatprep.subr.mxu0 0.0
          %1355 = vmatpush1.msra.mxu0 %v1294
          %1356 = vmatprep.subr.mxu0 0.0
          %1357 = vmatpush1.msra.mxu0 %v1295
          %1358 = vmatprep.subr.mxu0 0.0
          %1359 = vmatpush1.msra.mxu0 %v1296
          %1360 = vmatprep.subr.mxu0 0.0
          %1361 = vmatpush1.msra.mxu0 %v1297
          %1362 = vmatprep.subr.mxu0 0.0
          %1363 = vmatpush1.msra.mxu0 %v1298
          %1364 = vmatprep.subr.mxu0 0.0
          %1365 = vmatpush1.msra.mxu0 %v1299
          %1366 = vmatprep.subr.mxu0 0.0
          %1367 = vmatpush1.msra.mxu0 %v1300
          %1368 = vmatprep.subr.mxu0 0.0
          %1369 = vmatpush1.msra.mxu0 %v1301
          %1370 = vmatprep.subr.mxu0 0.0
          %1371 = vmatpush1.msra.mxu0 %v1302
          %1372 = vmatprep.subr.mxu0 0.0
          %1373 = vmatpush1.msra.mxu0 %v1303
          %1374 = vmatprep.subr.mxu0 0.0
          %1375 = vmatpush1.msra.mxu0 %v1304
          %1376 = vmatprep.subr.mxu0 0.0
          %1377 = vmatpush1.msra.mxu0 %v1305
          %1378 = vmatprep.subr.mxu0 0.0
          %1379 = vmatpush1.msra.mxu0 %v1306
          %1380 = vmatprep.subr.mxu0 0.0
          %1381 = vmatpush1.msra.mxu0 %v1307
          %1382 = vmatprep.subr.mxu0 0.0
          %1383 = vmatpush1.msra.mxu0 %v1308
          %1384 = vmatprep.subr.mxu0 0.0
          %1385 = vmatpush1.msra.mxu0 %v1309
          %1386 = vmatprep.subr.mxu0 0.0
          %1387 = vmatpush1.msra.mxu0 %v1310
          %1388 = vmatprep.subr.mxu0 0.0
          %1389 = vmatpush1.msra.mxu0 %v1311
          %1390 = vmatprep.subr.mxu0 0.0
          %1391 = vmatpush1.msra.mxu0 %v1312
          %1392 = vmatprep.subr.mxu0 0.0
          %1393 = vmatpush1.msra.mxu0 %v1313
          %1394 = vmatprep.subr.mxu0 0.0
          %1395 = vmatpush1.msra.mxu0 %v1314
          %1396 = vmatprep.mubr.f32.mxu0 %v1274
          %1397 = vmatmul.mubr.f32.gmra.mrb[0].mxu0 %v1272
          %v1398 = vpop.f32.mrb[0].mxu0
          %v1399 = vadd.f32 %v1331, %v1398
          %v1400 = vpop.f32.mrb[0].mxu0
          %1401 = vdwg.mxu0
          %1402 = vmatprep.subr.mxu0 0.0
          %1403 = vmatpush1.msra.mxu0 %v1315
          %1404 = vmatprep.subr.mxu0 0.0
          %1405 = vmatpush1.msra.mxu0 %v1316
          %1406 = vmatprep.subr.mxu0 0.0
          %1407 = vmatpush1.msra.mxu0 %v1317
          %1408 = vmatprep.subr.mxu0 0.0
          %1409 = vmatpush1.msra.mxu0 %v1318
          %1410 = vmatprep.subr.mxu0 0.0
          %1411 = vmatpush1.msra.mxu0 %v1319
          %1412 = vmatprep.subr.mxu0 0.0
          %1413 = vmatpush1.msra.mxu0 %v1320
          %1414 = vmatprep.subr.mxu0 0.0
          %1415 = vmatpush1.msra.mxu0 %v1321
          %1416 = vmatprep.subr.mxu0 0.0
          %1417 = vmatpush1.msra.mxu0 %v1322
          %1418 = vmatprep.subr.mxu0 0.0
          %1419 = vmatpush1.msra.mxu0 %v1323
          %1420 = vmatprep.subr.mxu0 0.0
          %1421 = vmatpush1.msra.mxu0 %v1324
          %1422 = vmatprep.subr.mxu0 0.0
          %1423 = vmatpush1.msra.mxu0 %v1325
          %1424 = vmatprep.subr.mxu0 0.0
          %1425 = vmatpush1.msra.mxu0 %v1326
          %1426 = vmatprep.subr.mxu0 0.0
          %1427 = vmatpush1.msra.mxu0 %v1327
          %1428 = vmatprep.subr.mxu0 0.0
          %1429 = vmatpush1.msra.mxu0 %v1328
          %1430 = vmatprep.subr.mxu0 0.0
          %1431 = vmatpush1.msra.mxu0 %v1329
          %1432 = vmatprep.subr.mxu0 0.0
          %1433 = vmatpush1.msra.mxu0 %v1330
          %1434 = vmatprep.subr.mxu0 0.0
          %1435 = vmatpush1.msra.mxu0 0.0
          %1436 = vmatprep.subr.mxu0 0.0
          %1437 = vmatpush1.msra.mxu0 0.0
          %1438 = vmatprep.subr.mxu0 0.0
          %1439 = vmatpush1.msra.mxu0 0.0
          %1440 = vmatprep.subr.mxu0 0.0
          %1441 = vmatpush1.msra.mxu0 0.0
          %1442 = vmatprep.subr.mxu0 0.0
          %1443 = vmatpush1.msra.mxu0 0.0
          %1444 = vmatprep.subr.mxu0 0.0
          %1445 = vmatpush1.msra.mxu0 0.0
          %1446 = vmatprep.subr.mxu0 0.0
          %1447 = vmatpush1.msra.mxu0 0.0
          %1448 = vmatprep.subr.mxu0 0.0
          %1449 = vmatpush1.msra.mxu0 0.0
          %1450 = vmatprep.subr.mxu0 0.0
          %1451 = vmatpush1.msra.mxu0 0.0
          %1452 = vmatprep.subr.mxu0 0.0
          %1453 = vmatpush1.msra.mxu0 0.0
          %1454 = vmatprep.subr.mxu0 0.0
          %1455 = vmatpush1.msra.mxu0 0.0
          %1456 = vmatprep.subr.mxu0 0.0
          %1457 = vmatpush1.msra.mxu0 0.0
          %1458 = vmatprep.subr.mxu0 0.0
          %1459 = vmatpush1.msra.mxu0 0.0
          %1460 = vmatprep.subr.mxu0 0.0
          %1461 = vmatpush1.msra.mxu0 0.0
          %1462 = vmatprep.subr.mxu0 0.0
          %1463 = vmatpush1.msra.mxu0 0.0
          %1464 = vmatprep.subr.mxu0 0.0
          %1465 = vmatpush1.msra.mxu0 0.0
          %1466 = vmatprep.mubr.f32.mxu0 0.0
          %1467 = vmatmul.mubr.f32.gmra.mrb[0].mxu0 %v1282
          %v1468 = vpop.f32.mrb[0].mxu0
          %v1469 = vadd.f32 %v1399, %v1468
          %v1470 = vpop.f32.mrb[0].mxu0
          %1471 = vdwg.mxu0
          %v1472 = vmul.f32 %v1469, %v1469
          %vm1473 = vcmask 1040384
          %v1474 = vsel %vm1473, %v1472, 0.0
          %1475 = vadd.xlane.f32.xlu0 %v1474
          %v1476 = vpop.xlane.xlu0 %1475
          %v1477 = vadd.f32 %v1476, 1e-12
          %v1478 = vrsqrt.pop %v1477
          %v1479 = vmul.f32 %v1469, %v1478
          %1480 = vst [vmem:[%s386] sm:$0x1] %v1479
        $region76: #{tpu_custom_call.1} parent=55 // pred_fallthru
          _
        %s1481 = sand.u32 %s241, 1
        %s1482 = scalar_lea.sflag [#allocation7], %s1481
        %s1483 = sand.u32 %s241, 1
        %s1484 = scalar_lea.vmem [#allocation11], %s1483
        // Predicated region
        $region77: #{tpu_custom_call.1} parent=55 // pred_check
          %p1485 = pneg %p251
        $region78: #{tpu_custom_call.1} parent=55 // pred_check_branch
          %1487 = sbr.rel (%p1485) target = $region80
        $region79: #{tpu_custom_call.1} parent=55 // pred_region
          %s1489 = ssub.s32 16, 16
          %1490 = vsyncadd %s1482, %s1489
          %s1491 = smul.addr %s29, 16
          %s1492 = scalar_lea.hbm %s9, %s1491
          %s1494 = sshll.u32 %s1484, 4
          %s1495 = int_to_ptr.vmem [resolvable:$true] %s1494
          %1497 = dma.vmem_to_hbm [thread:$0]  %s1495, 16, %s1492, %s1482
        $region80: #{tpu_custom_call.1} parent=55 // pred_fallthru
          _
      $region56: #{tpu_custom_call.1} parent=5 // pred_fallthru
        _
      %p1498 = scmp.le.s32.totalorder 2, %s20
      // Predicated region
      $region81: #{tpu_custom_call.1} parent=5 // pred_check
        %p1499 = pneg %p1498
      $region82: #{tpu_custom_call.1} parent=5 // pred_check_branch
        %1501 = sbr.rel (%p1499) target = $region84
      $region83: #{tpu_custom_call.1} parent=5 // pred_region
        %s1502 = ssub.s32 %s20, 2
        // Predicated region
        $region85: #{tpu_custom_call.1} parent=83 // pred_check
          %p1503 = pneg %p257
        $region86: #{tpu_custom_call.1} parent=83 // pred_check_branch
          %1505 = sbr.rel (%p1503) target = $region88
        $region87: #{tpu_custom_call.1} parent=83 // pred_region
          %s1506 = sand.u32 %s242, 1
          %s1507 = scalar_lea.sflag [#allocation7], %s1506
          %s1508 = sand.u32 %s242, 1
          %s1509 = scalar_lea.vmem [#allocation11], %s1508
          %1510 = dma.done %s1507, 16
        $region88: #{tpu_custom_call.1} parent=83 // pred_fallthru
          _
      $region84: #{tpu_custom_call.1} parent=5 // pred_fallthru
        _
    $region6: #{tpu_custom_call.1} parent=1 // loop_footer
      %s24 = sadd.s32 1, %s20
    $region7: #{tpu_custom_call.1} parent=1 // loop_footer_branch
      %19 = sbr.rel target = $region3
    $region8: #{tpu_custom_call.1} parent=1 // loop_exit
      _
    %1511 = vsyncpa [#allocation6], 1
    %s1512 = scalar_lea.sflag [#allocation6], 1
    %1513 = vsyncpa %s1512, 1
    %1514 = vsyncpa [#allocation9], 1
    %1515 = vsyncpa [#allocation7], 1
    %s1516 = scalar_lea.sflag [#allocation7], 1
    %1517 = vsyncpa %s1516, 1

</llo_original>
